<compile_context>
chip_gen: v6e
topology: v6e:2x2x1
jax: 0.10.0
libtpu: 0.0.40
codegen_flags: <defaults>
</compile_context>

<pallas_src>
import functools

import jax
import jax.numpy as jnp
from jax.experimental import pallas as pl
from jax.experimental.pallas import tpu as pltpu


def _layernorm(x, gamma, beta, eps=1e-5):
    mean = jnp.mean(x, axis=-1, keepdims=True)
    var = jnp.mean(jnp.square(x - mean), axis=-1, keepdims=True)
    return (x - mean) * jax.lax.rsqrt(var + eps) * gamma + beta


def _residual_attention_block_kernel(
    x_ref, mask_ref,
    ln1_g_ref, ln1_b_ref,
    w_qkv_ref, b_qkv_ref,
    w_out_ref, b_out_ref,
    ln2_g_ref, ln2_b_ref,
    w_fc_ref, b_fc_ref,
    w_proj_ref, b_proj_ref,
    o_ref,
    *, n_head):
    x = x_ref[...]                       # (B, L, E) f32
    mask = mask_ref[...]                 # (B, L, L) additive f32 mask
    B, L, E = x.shape
    D = E // n_head
    T = B * L

    x2d = x.reshape(T, E)                # flatten batch*seq for big-M matmuls

    # ----- x = x + out_proj(MHA(ln_1(x))) -----
    h = _layernorm(x2d, ln1_g_ref[0], ln1_b_ref[0])
    # 1/sqrt(D) is already folded into the Q columns of w_qkv / b_qkv (wrapper).
    qkv = jnp.dot(h.astype(jnp.bfloat16), w_qkv_ref[...],
                  preferred_element_type=jnp.float32) + b_qkv_ref[0]   # (T, 3E) f32

    attn_acc = jnp.zeros((T, E), jnp.float32)
    for hd in range(n_head):             # statically unrolled; each iter is B-batched
        lo = hd * D
        qh = qkv[:, lo:lo + D].reshape(B, L, D).astype(jnp.bfloat16)
        kh = qkv[:, E + lo:E + lo + D].reshape(B, L, D).astype(jnp.bfloat16)
        vh = qkv[:, 2 * E + lo:2 * E + lo + D].reshape(B, L, D).astype(jnp.bfloat16)

        s = jnp.einsum('bld,bmd->blm', qh, kh,
                       preferred_element_type=jnp.float32) + mask      # (B, L, L) f32
        s = s - jnp.max(s, axis=-1, keepdims=True)
        p = jnp.exp(s)
        p = p * pl.reciprocal(jnp.sum(p, axis=-1, keepdims=True), approx=True)

        oh = jnp.einsum('blm,bmd->bld', p.astype(jnp.bfloat16), vh,
                        preferred_element_type=jnp.float32)            # (B, L, D) f32

        # out_proj without a lane-axis concat: sum_h O_h @ W_out[h*D:(h+1)*D, :]
        attn_acc = attn_acc + jnp.dot(
            oh.reshape(T, D).astype(jnp.bfloat16),
            w_out_ref[lo:lo + D, :],
            preferred_element_type=jnp.float32)

    x1 = x2d + attn_acc + b_out_ref[0]

    # ----- x = x + c_proj(QuickGELU(c_fc(ln_2(x)))) -----
    h2 = _layernorm(x1, ln2_g_ref[0], ln2_b_ref[0])
    f = jnp.dot(h2.astype(jnp.bfloat16), w_fc_ref[...],
                preferred_element_type=jnp.float32) + b_fc_ref[0]
    f = f * jax.nn.sigmoid(1.702 * f)                                   # QuickGELU (f32)
    m = jnp.dot(f.astype(jnp.bfloat16), w_proj_ref[...],
                preferred_element_type=jnp.float32) + b_proj_ref[0]

    o_ref[...] = (x1 + m).reshape(B, L, E)


def residual_attention_block(x, attn_mask, params, n_head, b_tile=None):
    """x: (L, N, E) f32; attn_mask: (N, L, L) additive float mask.
    Returns (out, attn_mask) with out: (L, N, E), matching the PyTorch module."""
    L, N, E = x.shape
    D = E // n_head
    scale = 1.0 / float(D) ** 0.5

    if b_tile is None:
        # Largest divisor of N keeping the per-step token count modest (VMEM bound).
        b_tile = 1
        for c in range(1, N + 1):
            if N % c == 0 and c * L <= 512:
                b_tile = c
    assert N % b_tile == 0

    # TODO(synk): accept (N, L, E) natively (or express the batch slice via a
    # squeezed-dim BlockSpec on the original (L, N, E) layout) to avoid these two
    # full-array HBM transposes.
    x_b = jnp.transpose(x, (1, 0, 2))    # (N, L, E)

    # Pre-transpose Linear weights (PyTorch stores (out, in)) so the kernel does x @ W,
    # fold the attention scale into Q, and cast matmul weights to bf16 (host-side).
    w_qkv = params["in_proj_weight"].T                      # (E, 3E)
    w_qkv = w_qkv.at[:, :E].multiply(scale)
    b_qkv = params["in_proj_bias"].at[:E].multiply(scale)   # (3E,)
    w_out = params["out_proj_weight"].T                     # (E, E)
    w_fc = params["fc_weight"].T                            # (E, 4E)
    w_proj = params["proj_weight"].T                        # (4E, E)
    bf16 = jnp.bfloat16
    w_qkv, w_out, w_fc, w_proj = (w.astype(bf16) for w in (w_qkv, w_out, w_fc, w_proj))

    row = lambda v: v.reshape(1, -1).astype(jnp.float32)    # 1D params as (1, dim)
    wspec = lambda shape: pl.BlockSpec(shape, lambda i: (0, 0))

    out = pl.pallas_call(
        functools.partial(_residual_attention_block_kernel, n_head=n_head),
        out_shape=jax.ShapeDtypeStruct((N, L, E), jnp.float32),
        grid=(N // b_tile,),
        in_specs=[
            pl.BlockSpec((b_tile, L, E), lambda i: (i, 0, 0)),      # x
            pl.BlockSpec((b_tile, L, L), lambda i: (i, 0, 0)),      # attn_mask
            wspec((1, E)), wspec((1, E)),                           # ln_1 gamma/beta
            wspec((E, 3 * E)), wspec((1, 3 * E)),                   # in_proj W, b
            wspec((E, E)), wspec((1, E)),                           # out_proj W, b
            wspec((1, E)), wspec((1, E)),                           # ln_2 gamma/beta
            wspec((E, 4 * E)), wspec((1, 4 * E)),                   # c_fc W, b
            wspec((4 * E, E)), wspec((1, E)),                       # c_proj W, b
        ],
        out_specs=pl.BlockSpec((b_tile, L, E), lambda i: (i, 0, 0)),
        compiler_params=pltpu.CompilerParams(
            dimension_semantics=("parallel",),
            vmem_limit_bytes=48 * 1024 * 1024),
    )(
        x_b, attn_mask,
        row(params["ln1_gamma"]), row(params["ln1_beta"]),
        w_qkv, row(b_qkv),
        w_out, row(params["out_proj_bias"]),
        row(params["ln2_gamma"]), row(params["ln2_beta"]),
        w_fc, row(params["fc_bias"]),
        w_proj, row(params["proj_bias"]),
    )
    return jnp.transpose(out, (1, 0, 2)), attn_mask


def init_params(key, d_model):
    ks = jax.random.split(key, 8)
    std = 0.02
    return {
        "ln1_gamma": jnp.ones((d_model,), jnp.float32),
        "ln1_beta": jnp.zeros((d_model,), jnp.float32),
        "in_proj_weight": std * jax.random.normal(ks[0], (3 * d_model, d_model), jnp.float32),
        "in_proj_bias": std * jax.random.normal(ks[1], (3 * d_model,), jnp.float32),
        "out_proj_weight": std * jax.random.normal(ks[2], (d_model, d_model), jnp.float32),
        "out_proj_bias": std * jax.random.normal(ks[3], (d_model,), jnp.float32),
        "ln2_gamma": jnp.ones((d_model,), jnp.float32),
        "ln2_beta": jnp.zeros((d_model,), jnp.float32),
        "fc_weight": std * jax.random.normal(ks[4], (4 * d_model, d_model), jnp.float32),
        "fc_bias": std * jax.random.normal(ks[5], (4 * d_model,), jnp.float32),
        "proj_weight": std * jax.random.normal(ks[6], (d_model, 4 * d_model), jnp.float32),
        "proj_bias": std * jax.random.normal(ks[7], (d_model,), jnp.float32),
    }


if __name__ == "__main__":
    L, N, d_model, n_head = 8, 2, 32, 4

    key = jax.random.PRNGKey(0)
    k_x, k_m, k_p = jax.random.split(key, 3)

    x = jax.random.normal(k_x, (L, N, d_model), jnp.float32)
    # Additive float attention mask (N, L, L): mostly zeros with some masked-out positions.
    mask_bits = jax.random.bernoulli(k_m, 0.2, (N, L, L))
    attn_mask = jnp.where(mask_bits, jnp.float32(-1e9), jnp.float32(0.0))

    params = init_params(k_p, d_model)

    out, out_mask = residual_attention_block(x, attn_mask, params, n_head)
    jax.block_until_ready(out)
    assert out.shape == (L, N, d_model)
    assert out_mask.shape == (N, L, L)
    print("KERNEL_OK")
</pallas_src>

<mosaic_0001>
module attributes {stable_mosaic.version = 11 : i64} {
  func.func @_residual_attention_block_kernel(%arg0: i32, %arg1: memref<2x8x32xf32, #tpu.memory_space<vmem>>, %arg2: memref<2x8x8xf32, #tpu.memory_space<vmem>>, %arg3: memref<1x32xf32, #tpu.memory_space<vmem>>, %arg4: memref<1x32xf32, #tpu.memory_space<vmem>>, %arg5: memref<32x96xbf16, #tpu.memory_space<vmem>>, %arg6: memref<1x96xf32, #tpu.memory_space<vmem>>, %arg7: memref<32x32xbf16, #tpu.memory_space<vmem>>, %arg8: memref<1x32xf32, #tpu.memory_space<vmem>>, %arg9: memref<1x32xf32, #tpu.memory_space<vmem>>, %arg10: memref<1x32xf32, #tpu.memory_space<vmem>>, %arg11: memref<32x128xbf16, #tpu.memory_space<vmem>>, %arg12: memref<1x128xf32, #tpu.memory_space<vmem>>, %arg13: memref<128x32xbf16, #tpu.memory_space<vmem>>, %arg14: memref<1x32xf32, #tpu.memory_space<vmem>>, %arg15: memref<2x8x32xf32, #tpu.memory_space<vmem>>) attributes {dimension_semantics = [#tpu.dimension_semantics<parallel>], iteration_bounds = array<i64: 1>, scalar_prefetch = 0 : i64, scratch_operands = 0 : i64, tpu.core_type = #tpu.core_type<tc>, window_params = [{transform_indices = @transform_0, window_bounds = array<i64: 2, 8, 32>}, {transform_indices = @transform_1, window_bounds = array<i64: 2, 8, 8>}, {pipeline_mode = #tpu.pipeline_mode<synchronous>, transform_indices = @transform_2, window_bounds = array<i64: 1, 32>}, {pipeline_mode = #tpu.pipeline_mode<synchronous>, transform_indices = @transform_3, window_bounds = array<i64: 1, 32>}, {pipeline_mode = #tpu.pipeline_mode<synchronous>, transform_indices = @transform_4, window_bounds = array<i64: 32, 96>}, {pipeline_mode = #tpu.pipeline_mode<synchronous>, transform_indices = @transform_5, window_bounds = array<i64: 1, 96>}, {pipeline_mode = #tpu.pipeline_mode<synchronous>, transform_indices = @transform_6, window_bounds = array<i64: 32, 32>}, {pipeline_mode = #tpu.pipeline_mode<synchronous>, transform_indices = @transform_7, window_bounds = array<i64: 1, 32>}, {pipeline_mode = #tpu.pipeline_mode<synchronous>, transform_indices = @transform_8, window_bounds = array<i64: 1, 32>}, {pipeline_mode = #tpu.pipeline_mode<synchronous>, transform_indices = @transform_9, window_bounds = array<i64: 1, 32>}, {pipeline_mode = #tpu.pipeline_mode<synchronous>, transform_indices = @transform_10, window_bounds = array<i64: 32, 128>}, {pipeline_mode = #tpu.pipeline_mode<synchronous>, transform_indices = @transform_11, window_bounds = array<i64: 1, 128>}, {pipeline_mode = #tpu.pipeline_mode<synchronous>, transform_indices = @transform_12, window_bounds = array<i64: 128, 32>}, {pipeline_mode = #tpu.pipeline_mode<synchronous>, transform_indices = @transform_13, window_bounds = array<i64: 1, 32>}, {transform_indices = @transform_14, window_bounds = array<i64: 2, 8, 32>}]} {
    %c0 = arith.constant 0 : index
    %c0_0 = arith.constant 0 : index
    %c0_1 = arith.constant 0 : index
    %0 = vector.load %arg1[%c0, %c0_0, %c0_1] : memref<2x8x32xf32, #tpu.memory_space<vmem>>, vector<2x8x32xf32>
    %c0_2 = arith.constant 0 : index
    %c0_3 = arith.constant 0 : index
    %c0_4 = arith.constant 0 : index
    %1 = vector.load %arg2[%c0_2, %c0_3, %c0_4] : memref<2x8x8xf32, #tpu.memory_space<vmem>>, vector<2x8x8xf32>
    %2 = vector.shape_cast %0 : vector<2x8x32xf32> to vector<16x32xf32>
    %c0_5 = arith.constant 0 : index
    %c0_6 = arith.constant 0 : index
    %3 = vector.load %arg3[%c0_5, %c0_6] : memref<1x32xf32, #tpu.memory_space<vmem>>, vector<1x32xf32>
    %4 = vector.shape_cast %3 : vector<1x32xf32> to vector<32xf32>
    %c0_7 = arith.constant 0 : index
    %c0_8 = arith.constant 0 : index
    %5 = vector.load %arg4[%c0_7, %c0_8] : memref<1x32xf32, #tpu.memory_space<vmem>>, vector<1x32xf32>
    %6 = vector.shape_cast %5 : vector<1x32xf32> to vector<32xf32>
    %cst = arith.constant dense<0.000000e+00> : vector<16xf32>
    %7 = vector.multi_reduction <add>, %2, %cst [1] : vector<16x32xf32> to vector<16xf32>
    %8 = vector.shape_cast %7 : vector<16xf32> to vector<16x1xf32>
    %cst_9 = arith.constant 3.200000e+01 : f32
    %9 = vector.broadcast %cst_9 : f32 to vector<16x1xf32>
    %10 = arith.divf %8, %9 : vector<16x1xf32>
    %11 = vector.broadcast %10 : vector<16x1xf32> to vector<16x32xf32>
    %12 = arith.subf %2, %11 : vector<16x32xf32>
    %13 = arith.mulf %12, %12 : vector<16x32xf32>
    %cst_10 = arith.constant dense<0.000000e+00> : vector<16xf32>
    %14 = vector.multi_reduction <add>, %13, %cst_10 [1] : vector<16x32xf32> to vector<16xf32>
    %15 = vector.shape_cast %14 : vector<16xf32> to vector<16x1xf32>
    %cst_11 = arith.constant 3.200000e+01 : f32
    %16 = vector.broadcast %cst_11 : f32 to vector<16x1xf32>
    %17 = arith.divf %15, %16 : vector<16x1xf32>
    %18 = vector.broadcast %10 : vector<16x1xf32> to vector<16x32xf32>
    %19 = arith.subf %2, %18 : vector<16x32xf32>
    %cst_12 = arith.constant 9.99999974E-6 : f32
    %20 = vector.broadcast %cst_12 : f32 to vector<16x1xf32>
    %21 = arith.addf %17, %20 : vector<16x1xf32>
    %22 = math.rsqrt %21 : vector<16x1xf32>
    %23 = vector.broadcast %22 : vector<16x1xf32> to vector<16x32xf32>
    %24 = arith.mulf %19, %23 : vector<16x32xf32>
    %25 = vector.shape_cast %4 : vector<32xf32> to vector<1x32xf32>
    %26 = vector.broadcast %25 : vector<1x32xf32> to vector<16x32xf32>
    %27 = arith.mulf %24, %26 : vector<16x32xf32>
    %28 = vector.shape_cast %6 : vector<32xf32> to vector<1x32xf32>
    %29 = vector.broadcast %28 : vector<1x32xf32> to vector<16x32xf32>
    %30 = arith.addf %27, %29 : vector<16x32xf32>
    %31 = arith.truncf %30 : vector<16x32xf32> to vector<16x32xbf16>
    %c0_13 = arith.constant 0 : index
    %c0_14 = arith.constant 0 : index
    %32 = vector.load %arg5[%c0_13, %c0_14] : memref<32x96xbf16, #tpu.memory_space<vmem>>, vector<32x96xbf16>
    %cst_15 = arith.constant dense<0.000000e+00> : vector<16x96xf32>
    %33 = tpu.matmul %31, %32, %cst_15 {dimension_numbers = #tpu.dot_dimension_numbers<[1], [0], [0], [1], [0, 0, 1, 1], [], []>} : vector<16x32xbf16>, vector<32x96xbf16>, vector<16x96xf32> -> vector<16x96xf32>
    %c0_16 = arith.constant 0 : index
    %c0_17 = arith.constant 0 : index
    %34 = vector.load %arg6[%c0_16, %c0_17] : memref<1x96xf32, #tpu.memory_space<vmem>>, vector<1x96xf32>
    %35 = vector.shape_cast %34 : vector<1x96xf32> to vector<96xf32>
    %36 = vector.shape_cast %35 : vector<96xf32> to vector<1x96xf32>
    %37 = vector.broadcast %36 : vector<1x96xf32> to vector<16x96xf32>
    %38 = arith.addf %33, %37 : vector<16x96xf32>
    %cst_18 = arith.constant 0.000000e+00 : f32
    %39 = vector.broadcast %cst_18 : f32 to vector<16x32xf32>
    %40 = vector.extract_strided_slice %38 {offsets = [0, 0], sizes = [16, 8], strides = [1, 1]} : vector<16x96xf32> to vector<16x8xf32>
    %41 = vector.shape_cast %40 : vector<16x8xf32> to vector<2x8x8xf32>
    %42 = arith.truncf %41 : vector<2x8x8xf32> to vector<2x8x8xbf16>
    %43 = vector.extract_strided_slice %38 {offsets = [0, 32], sizes = [16, 8], strides = [1, 1]} : vector<16x96xf32> to vector<16x8xf32>
    %44 = vector.shape_cast %43 : vector<16x8xf32> to vector<2x8x8xf32>
    %45 = arith.truncf %44 : vector<2x8x8xf32> to vector<2x8x8xbf16>
    %46 = vector.extract_strided_slice %38 {offsets = [0, 64], sizes = [16, 8], strides = [1, 1]} : vector<16x96xf32> to vector<16x8xf32>
    %47 = vector.shape_cast %46 : vector<16x8xf32> to vector<2x8x8xf32>
    %48 = arith.truncf %47 : vector<2x8x8xf32> to vector<2x8x8xbf16>
    "tpu.trace_start"() <{level = 10 : i32, message = "bld,bmd->blm"}> : () -> ()
    %cst_19 = arith.constant dense<0.000000e+00> : vector<2x8x8xf32>
    %49 = tpu.matmul %42, %45, %cst_19 {dimension_numbers = #tpu.dot_dimension_numbers<[2], [2], [1], [1], [0, 0, 0, 1, 1, 1], [0], [0]>} : vector<2x8x8xbf16>, vector<2x8x8xbf16>, vector<2x8x8xf32> -> vector<2x8x8xf32>
    "tpu.trace_stop"() : () -> ()
    %50 = arith.addf %49, %1 : vector<2x8x8xf32>
    %cst_20 = arith.constant dense<0xFF800000> : vector<2x8xf32>
    %51 = vector.multi_reduction <maximumf>, %50, %cst_20 [2] : vector<2x8x8xf32> to vector<2x8xf32>
    %52 = vector.shape_cast %51 : vector<2x8xf32> to vector<2x8x1xf32>
    %53 = vector.broadcast %52 : vector<2x8x1xf32> to vector<2x8x8xf32>
    %54 = arith.subf %50, %53 : vector<2x8x8xf32>
    %55 = math.exp %54 : vector<2x8x8xf32>
    %cst_21 = arith.constant dense<0.000000e+00> : vector<2x8xf32>
    %56 = vector.multi_reduction <add>, %55, %cst_21 [2] : vector<2x8x8xf32> to vector<2x8xf32>
    %57 = vector.shape_cast %56 : vector<2x8xf32> to vector<2x8x1xf32>
    %58 = tpu.reciprocal %57 {approx = true} : vector<2x8x1xf32> -> vector<2x8x1xf32>
    %59 = vector.broadcast %58 : vector<2x8x1xf32> to vector<2x8x8xf32>
    %60 = arith.mulf %55, %59 : vector<2x8x8xf32>
    %61 = arith.truncf %60 : vector<2x8x8xf32> to vector<2x8x8xbf16>
    "tpu.trace_start"() <{level = 10 : i32, message = "blm,bmd->bld"}> : () -> ()
    %cst_22 = arith.constant dense<0.000000e+00> : vector<2x8x8xf32>
    %62 = tpu.matmul %61, %48, %cst_22 {dimension_numbers = #tpu.dot_dimension_numbers<[2], [1], [1], [2], [0, 0, 0, 1, 1, 2], [0], [0]>} : vector<2x8x8xbf16>, vector<2x8x8xbf16>, vector<2x8x8xf32> -> vector<2x8x8xf32>
    "tpu.trace_stop"() : () -> ()
    %63 = vector.shape_cast %62 : vector<2x8x8xf32> to vector<16x8xf32>
    %64 = arith.truncf %63 : vector<16x8xf32> to vector<16x8xbf16>
    %c0_23 = arith.constant 0 : index
    %c0_24 = arith.constant 0 : index
    %65 = vector.load %arg7[%c0_23, %c0_24] : memref<32x32xbf16, #tpu.memory_space<vmem>>, vector<8x32xbf16>
    %cst_25 = arith.constant dense<0.000000e+00> : vector<16x32xf32>
    %66 = tpu.matmul %64, %65, %cst_25 {dimension_numbers = #tpu.dot_dimension_numbers<[1], [0], [0], [1], [0, 0, 1, 1], [], []>} : vector<16x8xbf16>, vector<8x32xbf16>, vector<16x32xf32> -> vector<16x32xf32>
    %67 = arith.addf %39, %66 : vector<16x32xf32>
    %68 = vector.extract_strided_slice %38 {offsets = [0, 8], sizes = [16, 8], strides = [1, 1]} : vector<16x96xf32> to vector<16x8xf32>
    %69 = vector.shape_cast %68 : vector<16x8xf32> to vector<2x8x8xf32>
    %70 = arith.truncf %69 : vector<2x8x8xf32> to vector<2x8x8xbf16>
    %71 = vector.extract_strided_slice %38 {offsets = [0, 40], sizes = [16, 8], strides = [1, 1]} : vector<16x96xf32> to vector<16x8xf32>
    %72 = vector.shape_cast %71 : vector<16x8xf32> to vector<2x8x8xf32>
    %73 = arith.truncf %72 : vector<2x8x8xf32> to vector<2x8x8xbf16>
    %74 = vector.extract_strided_slice %38 {offsets = [0, 72], sizes = [16, 8], strides = [1, 1]} : vector<16x96xf32> to vector<16x8xf32>
    %75 = vector.shape_cast %74 : vector<16x8xf32> to vector<2x8x8xf32>
    %76 = arith.truncf %75 : vector<2x8x8xf32> to vector<2x8x8xbf16>
    "tpu.trace_start"() <{level = 10 : i32, message = "bld,bmd->blm"}> : () -> ()
    %cst_26 = arith.constant dense<0.000000e+00> : vector<2x8x8xf32>
    %77 = tpu.matmul %70, %73, %cst_26 {dimension_numbers = #tpu.dot_dimension_numbers<[2], [2], [1], [1], [0, 0, 0, 1, 1, 1], [0], [0]>} : vector<2x8x8xbf16>, vector<2x8x8xbf16>, vector<2x8x8xf32> -> vector<2x8x8xf32>
    "tpu.trace_stop"() : () -> ()
    %78 = arith.addf %77, %1 : vector<2x8x8xf32>
    %cst_27 = arith.constant dense<0xFF800000> : vector<2x8xf32>
    %79 = vector.multi_reduction <maximumf>, %78, %cst_27 [2] : vector<2x8x8xf32> to vector<2x8xf32>
    %80 = vector.shape_cast %79 : vector<2x8xf32> to vector<2x8x1xf32>
    %81 = vector.broadcast %80 : vector<2x8x1xf32> to vector<2x8x8xf32>
    %82 = arith.subf %78, %81 : vector<2x8x8xf32>
    %83 = math.exp %82 : vector<2x8x8xf32>
    %cst_28 = arith.constant dense<0.000000e+00> : vector<2x8xf32>
    %84 = vector.multi_reduction <add>, %83, %cst_28 [2] : vector<2x8x8xf32> to vector<2x8xf32>
    %85 = vector.shape_cast %84 : vector<2x8xf32> to vector<2x8x1xf32>
    %86 = tpu.reciprocal %85 {approx = true} : vector<2x8x1xf32> -> vector<2x8x1xf32>
    %87 = vector.broadcast %86 : vector<2x8x1xf32> to vector<2x8x8xf32>
    %88 = arith.mulf %83, %87 : vector<2x8x8xf32>
    %89 = arith.truncf %88 : vector<2x8x8xf32> to vector<2x8x8xbf16>
    "tpu.trace_start"() <{level = 10 : i32, message = "blm,bmd->bld"}> : () -> ()
    %cst_29 = arith.constant dense<0.000000e+00> : vector<2x8x8xf32>
    %90 = tpu.matmul %89, %76, %cst_29 {dimension_numbers = #tpu.dot_dimension_numbers<[2], [1], [1], [2], [0, 0, 0, 1, 1, 2], [0], [0]>} : vector<2x8x8xbf16>, vector<2x8x8xbf16>, vector<2x8x8xf32> -> vector<2x8x8xf32>
    "tpu.trace_stop"() : () -> ()
    %91 = vector.shape_cast %90 : vector<2x8x8xf32> to vector<16x8xf32>
    %92 = arith.truncf %91 : vector<16x8xf32> to vector<16x8xbf16>
    %c8 = arith.constant 8 : index
    %c0_30 = arith.constant 0 : index
    %93 = vector.load %arg7[%c8, %c0_30] : memref<32x32xbf16, #tpu.memory_space<vmem>>, vector<8x32xbf16>
    %cst_31 = arith.constant dense<0.000000e+00> : vector<16x32xf32>
    %94 = tpu.matmul %92, %93, %cst_31 {dimension_numbers = #tpu.dot_dimension_numbers<[1], [0], [0], [1], [0, 0, 1, 1], [], []>} : vector<16x8xbf16>, vector<8x32xbf16>, vector<16x32xf32> -> vector<16x32xf32>
    %95 = arith.addf %67, %94 : vector<16x32xf32>
    %96 = vector.extract_strided_slice %38 {offsets = [0, 16], sizes = [16, 8], strides = [1, 1]} : vector<16x96xf32> to vector<16x8xf32>
    %97 = vector.shape_cast %96 : vector<16x8xf32> to vector<2x8x8xf32>
    %98 = arith.truncf %97 : vector<2x8x8xf32> to vector<2x8x8xbf16>
    %99 = vector.extract_strided_slice %38 {offsets = [0, 48], sizes = [16, 8], strides = [1, 1]} : vector<16x96xf32> to vector<16x8xf32>
    %100 = vector.shape_cast %99 : vector<16x8xf32> to vector<2x8x8xf32>
    %101 = arith.truncf %100 : vector<2x8x8xf32> to vector<2x8x8xbf16>
    %102 = vector.extract_strided_slice %38 {offsets = [0, 80], sizes = [16, 8], strides = [1, 1]} : vector<16x96xf32> to vector<16x8xf32>
    %103 = vector.shape_cast %102 : vector<16x8xf32> to vector<2x8x8xf32>
    %104 = arith.truncf %103 : vector<2x8x8xf32> to vector<2x8x8xbf16>
    "tpu.trace_start"() <{level = 10 : i32, message = "bld,bmd->blm"}> : () -> ()
    %cst_32 = arith.constant dense<0.000000e+00> : vector<2x8x8xf32>
    %105 = tpu.matmul %98, %101, %cst_32 {dimension_numbers = #tpu.dot_dimension_numbers<[2], [2], [1], [1], [0, 0, 0, 1, 1, 1], [0], [0]>} : vector<2x8x8xbf16>, vector<2x8x8xbf16>, vector<2x8x8xf32> -> vector<2x8x8xf32>
    "tpu.trace_stop"() : () -> ()
    %106 = arith.addf %105, %1 : vector<2x8x8xf32>
    %cst_33 = arith.constant dense<0xFF800000> : vector<2x8xf32>
    %107 = vector.multi_reduction <maximumf>, %106, %cst_33 [2] : vector<2x8x8xf32> to vector<2x8xf32>
    %108 = vector.shape_cast %107 : vector<2x8xf32> to vector<2x8x1xf32>
    %109 = vector.broadcast %108 : vector<2x8x1xf32> to vector<2x8x8xf32>
    %110 = arith.subf %106, %109 : vector<2x8x8xf32>
    %111 = math.exp %110 : vector<2x8x8xf32>
    %cst_34 = arith.constant dense<0.000000e+00> : vector<2x8xf32>
    %112 = vector.multi_reduction <add>, %111, %cst_34 [2] : vector<2x8x8xf32> to vector<2x8xf32>
    %113 = vector.shape_cast %112 : vector<2x8xf32> to vector<2x8x1xf32>
    %114 = tpu.reciprocal %113 {approx = true} : vector<2x8x1xf32> -> vector<2x8x1xf32>
    %115 = vector.broadcast %114 : vector<2x8x1xf32> to vector<2x8x8xf32>
    %116 = arith.mulf %111, %115 : vector<2x8x8xf32>
    %117 = arith.truncf %116 : vector<2x8x8xf32> to vector<2x8x8xbf16>
    "tpu.trace_start"() <{level = 10 : i32, message = "blm,bmd->bld"}> : () -> ()
    %cst_35 = arith.constant dense<0.000000e+00> : vector<2x8x8xf32>
    %118 = tpu.matmul %117, %104, %cst_35 {dimension_numbers = #tpu.dot_dimension_numbers<[2], [1], [1], [2], [0, 0, 0, 1, 1, 2], [0], [0]>} : vector<2x8x8xbf16>, vector<2x8x8xbf16>, vector<2x8x8xf32> -> vector<2x8x8xf32>
    "tpu.trace_stop"() : () -> ()
    %119 = vector.shape_cast %118 : vector<2x8x8xf32> to vector<16x8xf32>
    %120 = arith.truncf %119 : vector<16x8xf32> to vector<16x8xbf16>
    %c16 = arith.constant 16 : index
    %c0_36 = arith.constant 0 : index
    %121 = vector.load %arg7[%c16, %c0_36] : memref<32x32xbf16, #tpu.memory_space<vmem>>, vector<8x32xbf16>
    %cst_37 = arith.constant dense<0.000000e+00> : vector<16x32xf32>
    %122 = tpu.matmul %120, %121, %cst_37 {dimension_numbers = #tpu.dot_dimension_numbers<[1], [0], [0], [1], [0, 0, 1, 1], [], []>} : vector<16x8xbf16>, vector<8x32xbf16>, vector<16x32xf32> -> vector<16x32xf32>
    %123 = arith.addf %95, %122 : vector<16x32xf32>
    %124 = vector.extract_strided_slice %38 {offsets = [0, 24], sizes = [16, 8], strides = [1, 1]} : vector<16x96xf32> to vector<16x8xf32>
    %125 = vector.shape_cast %124 : vector<16x8xf32> to vector<2x8x8xf32>
    %126 = arith.truncf %125 : vector<2x8x8xf32> to vector<2x8x8xbf16>
    %127 = vector.extract_strided_slice %38 {offsets = [0, 56], sizes = [16, 8], strides = [1, 1]} : vector<16x96xf32> to vector<16x8xf32>
    %128 = vector.shape_cast %127 : vector<16x8xf32> to vector<2x8x8xf32>
    %129 = arith.truncf %128 : vector<2x8x8xf32> to vector<2x8x8xbf16>
    %130 = vector.extract_strided_slice %38 {offsets = [0, 88], sizes = [16, 8], strides = [1, 1]} : vector<16x96xf32> to vector<16x8xf32>
    %131 = vector.shape_cast %130 : vector<16x8xf32> to vector<2x8x8xf32>
    %132 = arith.truncf %131 : vector<2x8x8xf32> to vector<2x8x8xbf16>
    "tpu.trace_start"() <{level = 10 : i32, message = "bld,bmd->blm"}> : () -> ()
    %cst_38 = arith.constant dense<0.000000e+00> : vector<2x8x8xf32>
    %133 = tpu.matmul %126, %129, %cst_38 {dimension_numbers = #tpu.dot_dimension_numbers<[2], [2], [1], [1], [0, 0, 0, 1, 1, 1], [0], [0]>} : vector<2x8x8xbf16>, vector<2x8x8xbf16>, vector<2x8x8xf32> -> vector<2x8x8xf32>
    "tpu.trace_stop"() : () -> ()
    %134 = arith.addf %133, %1 : vector<2x8x8xf32>
    %cst_39 = arith.constant dense<0xFF800000> : vector<2x8xf32>
    %135 = vector.multi_reduction <maximumf>, %134, %cst_39 [2] : vector<2x8x8xf32> to vector<2x8xf32>
    %136 = vector.shape_cast %135 : vector<2x8xf32> to vector<2x8x1xf32>
    %137 = vector.broadcast %136 : vector<2x8x1xf32> to vector<2x8x8xf32>
    %138 = arith.subf %134, %137 : vector<2x8x8xf32>
    %139 = math.exp %138 : vector<2x8x8xf32>
    %cst_40 = arith.constant dense<0.000000e+00> : vector<2x8xf32>
    %140 = vector.multi_reduction <add>, %139, %cst_40 [2] : vector<2x8x8xf32> to vector<2x8xf32>
    %141 = vector.shape_cast %140 : vector<2x8xf32> to vector<2x8x1xf32>
    %142 = tpu.reciprocal %141 {approx = true} : vector<2x8x1xf32> -> vector<2x8x1xf32>
    %143 = vector.broadcast %142 : vector<2x8x1xf32> to vector<2x8x8xf32>
    %144 = arith.mulf %139, %143 : vector<2x8x8xf32>
    %145 = arith.truncf %144 : vector<2x8x8xf32> to vector<2x8x8xbf16>
    "tpu.trace_start"() <{level = 10 : i32, message = "blm,bmd->bld"}> : () -> ()
    %cst_41 = arith.constant dense<0.000000e+00> : vector<2x8x8xf32>
    %146 = tpu.matmul %145, %132, %cst_41 {dimension_numbers = #tpu.dot_dimension_numbers<[2], [1], [1], [2], [0, 0, 0, 1, 1, 2], [0], [0]>} : vector<2x8x8xbf16>, vector<2x8x8xbf16>, vector<2x8x8xf32> -> vector<2x8x8xf32>
    "tpu.trace_stop"() : () -> ()
    %147 = vector.shape_cast %146 : vector<2x8x8xf32> to vector<16x8xf32>
    %148 = arith.truncf %147 : vector<16x8xf32> to vector<16x8xbf16>
    %c24 = arith.constant 24 : index
    %c0_42 = arith.constant 0 : index
    %149 = vector.load %arg7[%c24, %c0_42] : memref<32x32xbf16, #tpu.memory_space<vmem>>, vector<8x32xbf16>
    %cst_43 = arith.constant dense<0.000000e+00> : vector<16x32xf32>
    %150 = tpu.matmul %148, %149, %cst_43 {dimension_numbers = #tpu.dot_dimension_numbers<[1], [0], [0], [1], [0, 0, 1, 1], [], []>} : vector<16x8xbf16>, vector<8x32xbf16>, vector<16x32xf32> -> vector<16x32xf32>
    %151 = arith.addf %123, %150 : vector<16x32xf32>
    %152 = arith.addf %2, %151 : vector<16x32xf32>
    %c0_44 = arith.constant 0 : index
    %c0_45 = arith.constant 0 : index
    %153 = vector.load %arg8[%c0_44, %c0_45] : memref<1x32xf32, #tpu.memory_space<vmem>>, vector<1x32xf32>
    %154 = vector.shape_cast %153 : vector<1x32xf32> to vector<32xf32>
    %155 = vector.shape_cast %154 : vector<32xf32> to vector<1x32xf32>
    %156 = vector.broadcast %155 : vector<1x32xf32> to vector<16x32xf32>
    %157 = arith.addf %152, %156 : vector<16x32xf32>
    %c0_46 = arith.constant 0 : index
    %c0_47 = arith.constant 0 : index
    %158 = vector.load %arg9[%c0_46, %c0_47] : memref<1x32xf32, #tpu.memory_space<vmem>>, vector<1x32xf32>
    %159 = vector.shape_cast %158 : vector<1x32xf32> to vector<32xf32>
    %c0_48 = arith.constant 0 : index
    %c0_49 = arith.constant 0 : index
    %160 = vector.load %arg10[%c0_48, %c0_49] : memref<1x32xf32, #tpu.memory_space<vmem>>, vector<1x32xf32>
    %161 = vector.shape_cast %160 : vector<1x32xf32> to vector<32xf32>
    %cst_50 = arith.constant dense<0.000000e+00> : vector<16xf32>
    %162 = vector.multi_reduction <add>, %157, %cst_50 [1] : vector<16x32xf32> to vector<16xf32>
    %163 = vector.shape_cast %162 : vector<16xf32> to vector<16x1xf32>
    %cst_51 = arith.constant 3.200000e+01 : f32
    %164 = vector.broadcast %cst_51 : f32 to vector<16x1xf32>
    %165 = arith.divf %163, %164 : vector<16x1xf32>
    %166 = vector.broadcast %165 : vector<16x1xf32> to vector<16x32xf32>
    %167 = arith.subf %157, %166 : vector<16x32xf32>
    %168 = arith.mulf %167, %167 : vector<16x32xf32>
    %cst_52 = arith.constant dense<0.000000e+00> : vector<16xf32>
    %169 = vector.multi_reduction <add>, %168, %cst_52 [1] : vector<16x32xf32> to vector<16xf32>
    %170 = vector.shape_cast %169 : vector<16xf32> to vector<16x1xf32>
    %cst_53 = arith.constant 3.200000e+01 : f32
    %171 = vector.broadcast %cst_53 : f32 to vector<16x1xf32>
    %172 = arith.divf %170, %171 : vector<16x1xf32>
    %173 = vector.broadcast %165 : vector<16x1xf32> to vector<16x32xf32>
    %174 = arith.subf %157, %173 : vector<16x32xf32>
    %cst_54 = arith.constant 9.99999974E-6 : f32
    %175 = vector.broadcast %cst_54 : f32 to vector<16x1xf32>
    %176 = arith.addf %172, %175 : vector<16x1xf32>
    %177 = math.rsqrt %176 : vector<16x1xf32>
    %178 = vector.broadcast %177 : vector<16x1xf32> to vector<16x32xf32>
    %179 = arith.mulf %174, %178 : vector<16x32xf32>
    %180 = vector.shape_cast %159 : vector<32xf32> to vector<1x32xf32>
    %181 = vector.broadcast %180 : vector<1x32xf32> to vector<16x32xf32>
    %182 = arith.mulf %179, %181 : vector<16x32xf32>
    %183 = vector.shape_cast %161 : vector<32xf32> to vector<1x32xf32>
    %184 = vector.broadcast %183 : vector<1x32xf32> to vector<16x32xf32>
    %185 = arith.addf %182, %184 : vector<16x32xf32>
    %186 = arith.truncf %185 : vector<16x32xf32> to vector<16x32xbf16>
    %c0_55 = arith.constant 0 : index
    %c0_56 = arith.constant 0 : index
    %187 = vector.load %arg11[%c0_55, %c0_56] : memref<32x128xbf16, #tpu.memory_space<vmem>>, vector<32x128xbf16>
    %cst_57 = arith.constant dense<0.000000e+00> : vector<16x128xf32>
    %188 = tpu.matmul %186, %187, %cst_57 {dimension_numbers = #tpu.dot_dimension_numbers<[1], [0], [0], [1], [0, 0, 1, 1], [], []>} : vector<16x32xbf16>, vector<32x128xbf16>, vector<16x128xf32> -> vector<16x128xf32>
    %c0_58 = arith.constant 0 : index
    %c0_59 = arith.constant 0 : index
    %189 = vector.load %arg12[%c0_58, %c0_59] : memref<1x128xf32, #tpu.memory_space<vmem>>, vector<1x128xf32>
    %190 = vector.shape_cast %189 : vector<1x128xf32> to vector<128xf32>
    %191 = vector.shape_cast %190 : vector<128xf32> to vector<1x128xf32>
    %192 = vector.broadcast %191 : vector<1x128xf32> to vector<16x128xf32>
    %193 = arith.addf %188, %192 : vector<16x128xf32>
    %cst_60 = arith.constant 1.702000e+00 : f32
    %194 = vector.broadcast %cst_60 : f32 to vector<16x128xf32>
    %195 = arith.mulf %194, %193 : vector<16x128xf32>
    %196 = arith.negf %195 : vector<16x128xf32>
    %197 = math.exp %196 : vector<16x128xf32>
    %cst_61 = arith.constant 1.000000e+00 : f32
    %198 = vector.broadcast %cst_61 : f32 to vector<16x128xf32>
    %199 = arith.addf %198, %197 : vector<16x128xf32>
    %200 = arith.divf %198, %199 : vector<16x128xf32>
    %201 = arith.mulf %193, %200 : vector<16x128xf32>
    %202 = arith.truncf %201 : vector<16x128xf32> to vector<16x128xbf16>
    %c0_62 = arith.constant 0 : index
    %c0_63 = arith.constant 0 : index
    %203 = vector.load %arg13[%c0_62, %c0_63] : memref<128x32xbf16, #tpu.memory_space<vmem>>, vector<128x32xbf16>
    %cst_64 = arith.constant dense<0.000000e+00> : vector<16x32xf32>
    %204 = tpu.matmul %202, %203, %cst_64 {dimension_numbers = #tpu.dot_dimension_numbers<[1], [0], [0], [1], [0, 0, 1, 1], [], []>} : vector<16x128xbf16>, vector<128x32xbf16>, vector<16x32xf32> -> vector<16x32xf32>
    %c0_65 = arith.constant 0 : index
    %c0_66 = arith.constant 0 : index
    %205 = vector.load %arg14[%c0_65, %c0_66] : memref<1x32xf32, #tpu.memory_space<vmem>>, vector<1x32xf32>
    %206 = vector.shape_cast %205 : vector<1x32xf32> to vector<32xf32>
    %207 = vector.shape_cast %206 : vector<32xf32> to vector<1x32xf32>
    %208 = vector.broadcast %207 : vector<1x32xf32> to vector<16x32xf32>
    %209 = arith.addf %204, %208 : vector<16x32xf32>
    %210 = arith.addf %157, %209 : vector<16x32xf32>
    %211 = vector.shape_cast %210 : vector<16x32xf32> to vector<2x8x32xf32>
    %c0_67 = arith.constant 0 : index
    %c0_68 = arith.constant 0 : index
    %c0_69 = arith.constant 0 : index
    %212 = vector.load %arg15[%c0_67, %c0_68, %c0_69] : memref<2x8x32xf32, #tpu.memory_space<vmem>>, vector<2x8x32xf32>
    tpu.vector_store %arg15[%c0_67, %c0_68, %c0_69], %211 {strides = array<i32>} : memref<2x8x32xf32, #tpu.memory_space<vmem>>, vector<2x8x32xf32>,
    return
  }
  func.func @transform_0(%arg0: i32) -> (i32, i32, i32) {
    %c0_i32 = arith.constant 0 : i32
    %c0_i32_0 = arith.constant 0 : i32
    %c0_i32_1 = arith.constant 0 : i32
    return %arg0, %c0_i32, %c0_i32_0 : i32, i32, i32
  }
  func.func @transform_1(%arg0: i32) -> (i32, i32, i32) {
    %c0_i32 = arith.constant 0 : i32
    %c0_i32_0 = arith.constant 0 : i32
    %c0_i32_1 = arith.constant 0 : i32
    return %arg0, %c0_i32, %c0_i32_0 : i32, i32, i32
  }
  func.func @transform_2(%arg0: i32) -> (i32, i32) {
    %c0_i32 = arith.constant 0 : i32
    %c0_i32_0 = arith.constant 0 : i32
    %c0_i32_1 = arith.constant 0 : i32
    return %c0_i32, %c0_i32_0 : i32, i32
  }
  func.func @transform_3(%arg0: i32) -> (i32, i32) {
    %c0_i32 = arith.constant 0 : i32
    %c0_i32_0 = arith.constant 0 : i32
    %c0_i32_1 = arith.constant 0 : i32
    return %c0_i32, %c0_i32_0 : i32, i32
  }
  func.func @transform_4(%arg0: i32) -> (i32, i32) {
    %c0_i32 = arith.constant 0 : i32
    %c0_i32_0 = arith.constant 0 : i32
    %c0_i32_1 = arith.constant 0 : i32
    return %c0_i32, %c0_i32_0 : i32, i32
  }
  func.func @transform_5(%arg0: i32) -> (i32, i32) {
    %c0_i32 = arith.constant 0 : i32
    %c0_i32_0 = arith.constant 0 : i32
    %c0_i32_1 = arith.constant 0 : i32
    return %c0_i32, %c0_i32_0 : i32, i32
  }
  func.func @transform_6(%arg0: i32) -> (i32, i32) {
    %c0_i32 = arith.constant 0 : i32
    %c0_i32_0 = arith.constant 0 : i32
    %c0_i32_1 = arith.constant 0 : i32
    return %c0_i32, %c0_i32_0 : i32, i32
  }
  func.func @transform_7(%arg0: i32) -> (i32, i32) {
    %c0_i32 = arith.constant 0 : i32
    %c0_i32_0 = arith.constant 0 : i32
    %c0_i32_1 = arith.constant 0 : i32
    return %c0_i32, %c0_i32_0 : i32, i32
  }
  func.func @transform_8(%arg0: i32) -> (i32, i32) {
    %c0_i32 = arith.constant 0 : i32
    %c0_i32_0 = arith.constant 0 : i32
    %c0_i32_1 = arith.constant 0 : i32
    return %c0_i32, %c0_i32_0 : i32, i32
  }
  func.func @transform_9(%arg0: i32) -> (i32, i32) {
    %c0_i32 = arith.constant 0 : i32
    %c0_i32_0 = arith.constant 0 : i32
    %c0_i32_1 = arith.constant 0 : i32
    return %c0_i32, %c0_i32_0 : i32, i32
  }
  func.func @transform_10(%arg0: i32) -> (i32, i32) {
    %c0_i32 = arith.constant 0 : i32
    %c0_i32_0 = arith.constant 0 : i32
    %c0_i32_1 = arith.constant 0 : i32
    return %c0_i32, %c0_i32_0 : i32, i32
  }
  func.func @transform_11(%arg0: i32) -> (i32, i32) {
    %c0_i32 = arith.constant 0 : i32
    %c0_i32_0 = arith.constant 0 : i32
    %c0_i32_1 = arith.constant 0 : i32
    return %c0_i32, %c0_i32_0 : i32, i32
  }
  func.func @transform_12(%arg0: i32) -> (i32, i32) {
    %c0_i32 = arith.constant 0 : i32
    %c0_i32_0 = arith.constant 0 : i32
    %c0_i32_1 = arith.constant 0 : i32
    return %c0_i32, %c0_i32_0 : i32, i32
  }
  func.func @transform_13(%arg0: i32) -> (i32, i32) {
    %c0_i32 = arith.constant 0 : i32
    %c0_i32_0 = arith.constant 0 : i32
    %c0_i32_1 = arith.constant 0 : i32
    return %c0_i32, %c0_i32_0 : i32, i32
  }
  func.func @transform_14(%arg0: i32) -> (i32, i32, i32) {
    %c0_i32 = arith.constant 0 : i32
    %c0_i32_0 = arith.constant 0 : i32
    %c0_i32_1 = arith.constant 0 : i32
    return %arg0, %c0_i32, %c0_i32_0 : i32, i32, i32
  }
}

</mosaic_0001>

<llo_original>
// kernel: tpu_custom_call.1
$region0: #{tpu_custom_call.1}
  #allocation0 [shape = 'u32[]', space=smem, size = 0x4, offset = 0x4, fixed_abs, tag = 'smem constant byte address 0x4 - core index']
  #allocation1 [shape = 'u32[144,128]{1,0:T(1,128)}', space=vmem, size = 0x12000, scoped, tag = 'internal scratch']
  %s0 = inlined_call_operand.vmem [shape: f32[2,8,32], index: 0, kind: input, shape index: {}]
  %s1 = inlined_call_operand.vmem [shape: f32[2,8,8], index: 1, kind: input, shape index: {}]
  %s2 = inlined_call_operand.vmem [shape: f32[1,32], index: 2, kind: input, shape index: {}]
  %s3 = inlined_call_operand.vmem [shape: f32[1,32], index: 3, kind: input, shape index: {}]
  %s4 = inlined_call_operand.vmem [shape: bf16[32,96], index: 4, kind: input, shape index: {}]
  %s5 = inlined_call_operand.vmem [shape: f32[1,96], index: 5, kind: input, shape index: {}]
  %s6 = inlined_call_operand.vmem [shape: bf16[32,32], index: 6, kind: input, shape index: {}]
  %s7 = inlined_call_operand.vmem [shape: f32[1,32], index: 7, kind: input, shape index: {}]
  %s8 = inlined_call_operand.vmem [shape: f32[1,32], index: 8, kind: input, shape index: {}]
  %s9 = inlined_call_operand.hbm [shape: f32[1,32], index: 9, kind: input, shape index: {}]
  %s10 = inlined_call_operand.vmem [shape: bf16[32,128], index: 10, kind: input, shape index: {}]
  %s11 = inlined_call_operand.hbm [shape: f32[1,128], index: 11, kind: input, shape index: {}]
  %s12 = inlined_call_operand.vmem [shape: bf16[128,32], index: 12, kind: input, shape index: {}]
  %s13 = inlined_call_operand.vmem [shape: f32[1,32], index: 13, kind: input, shape index: {}]
  %s14 = inlined_call_operand.hbm [shape: f32[2,8,32], index: 14, kind: output, shape index: {}]
  %s15 = sld [smem:[#allocation0]]
  $region74: #{tpu_custom_call.1} parent=0
    _
  %s17 = ssub.s32 1, %s15
  %s18 = scalar_select 0, %s17, %s15
  $region1: #{tpu_custom_call.1} parent=0
    #allocation2 [shape = 'u8[512]{0}', space=vmem, size = 0x400, scoped, tag = 'input window, operand 9, single buffered']
    #allocation3 [shape = 's32[1]{0}', space=sflag, size = 0x4, scoped, tag = 'scoped memory for tpu_custom_call.1']
    #allocation4 [shape = 's32[1]{0}', space=sflag, size = 0x4, scoped, tag = 'scoped memory for tpu_custom_call.1']
    #allocation5 [shape = 'u8[512]{0}', space=vmem, size = 0x400, scoped, tag = 'input window, operand 11, single buffered']
    #allocation6 [shape = 's32[1]{0}', space=sflag, size = 0x4, scoped, tag = 'scoped memory for tpu_custom_call.1']
    #allocation7 [shape = 'u8[8192]{0}', space=vmem, size = 0x2000, scoped, tag = 'output window, operand 0, single buffered']
    %19 = vsyncpa [#allocation3], 0
    %20 = vsyncpa [#allocation6], 0
    %21 = vsyncpa [#allocation4], 0
    // Predicated region
    $region2: #{tpu_custom_call.1} parent=1 // pred_check
      _
    $region3: #{tpu_custom_call.1} parent=1 // pred_check_branch
      %23 = sbr.rel (0) target = $region5
    $region4: #{tpu_custom_call.1} parent=1 // pred_region
      _
    $region5: #{tpu_custom_call.1} parent=1 // pred_fallthru
      _
    // Predicated region
    $region6: #{tpu_custom_call.1} parent=1 // pred_check
      _
    $region7: #{tpu_custom_call.1} parent=1 // pred_check_branch
      %25 = sbr.rel (0) target = $region9
    $region8: #{tpu_custom_call.1} parent=1 // pred_region
      _
    $region9: #{tpu_custom_call.1} parent=1 // pred_fallthru
      _
    // Predicated region
    $region10: #{tpu_custom_call.1} parent=1 // pred_check
      _
    $region11: #{tpu_custom_call.1} parent=1 // pred_check_branch
      %27 = sbr.rel (0) target = $region13
    $region12: #{tpu_custom_call.1} parent=1 // pred_region
      _
    $region13: #{tpu_custom_call.1} parent=1 // pred_fallthru
      _
    // Predicated region
    $region14: #{tpu_custom_call.1} parent=1 // pred_check
      _
    $region15: #{tpu_custom_call.1} parent=1 // pred_check_branch
      %29 = sbr.rel (0) target = $region17
    $region16: #{tpu_custom_call.1} parent=1 // pred_region
      _
    $region17: #{tpu_custom_call.1} parent=1 // pred_fallthru
      _
    // Predicated region
    $region18: #{tpu_custom_call.1} parent=1 // pred_check
      _
    $region19: #{tpu_custom_call.1} parent=1 // pred_check_branch
      %31 = sbr.rel (0) target = $region21
    $region20: #{tpu_custom_call.1} parent=1 // pred_region
      _
    $region21: #{tpu_custom_call.1} parent=1 // pred_fallthru
      _
    // Predicated region
    $region22: #{tpu_custom_call.1} parent=1 // pred_check
      _
    $region23: #{tpu_custom_call.1} parent=1 // pred_check_branch
      %33 = sbr.rel (0) target = $region25
    $region24: #{tpu_custom_call.1} parent=1 // pred_region
      _
    $region25: #{tpu_custom_call.1} parent=1 // pred_fallthru
      _
    // Predicated region
    $region26: #{tpu_custom_call.1} parent=1 // pred_check
      _
    $region27: #{tpu_custom_call.1} parent=1 // pred_check_branch
      %35 = sbr.rel (0) target = $region29
    $region28: #{tpu_custom_call.1} parent=1 // pred_region
      _
    $region29: #{tpu_custom_call.1} parent=1 // pred_fallthru
      _
    // Predicated region
    $region30: #{tpu_custom_call.1} parent=1 // pred_check
      _
    $region31: #{tpu_custom_call.1} parent=1 // pred_check_branch
      %37 = sbr.rel (0) target = $region33
    $region32: #{tpu_custom_call.1} parent=1 // pred_region
      _
    $region33: #{tpu_custom_call.1} parent=1 // pred_fallthru
      _
    // Predicated region
    $region34: #{tpu_custom_call.1} parent=1 // pred_check
      _
    $region35: #{tpu_custom_call.1} parent=1 // pred_check_branch
      %39 = sbr.rel (0) target = $region37
    $region36: #{tpu_custom_call.1} parent=1 // pred_region
      _
    $region37: #{tpu_custom_call.1} parent=1 // pred_fallthru
      _
    // Predicated region
    $region38: #{tpu_custom_call.1} parent=1 // pred_check
      _
    $region39: #{tpu_custom_call.1} parent=1 // pred_check_branch
      %41 = sbr.rel (0) target = $region41
    $region40: #{tpu_custom_call.1} parent=1 // pred_region
      %s43 = ssub.s32 16, 16
      %44 = vsyncadd [#allocation3], %s43
      %s46 = sshll.u32 [#allocation2], 4
      %s47 = int_to_ptr.vmem [resolvable:$true] %s46
      %49 = dma.hbm_to_vmem [thread:$0]  %s9, 16, %s47, [#allocation3]
    $region41: #{tpu_custom_call.1} parent=1 // pred_fallthru
      _
    // Predicated region
    $region42: #{tpu_custom_call.1} parent=1 // pred_check
      _
    $region43: #{tpu_custom_call.1} parent=1 // pred_check_branch
      %51 = sbr.rel (0) target = $region45
    $region44: #{tpu_custom_call.1} parent=1 // pred_region
      _
    $region45: #{tpu_custom_call.1} parent=1 // pred_fallthru
      _
    // Predicated region
    $region46: #{tpu_custom_call.1} parent=1 // pred_check
      _
    $region47: #{tpu_custom_call.1} parent=1 // pred_check_branch
      %53 = sbr.rel (0) target = $region49
    $region48: #{tpu_custom_call.1} parent=1 // pred_region
      %s55 = ssub.s32 16, 16
      %56 = vsyncadd [#allocation6], %s55
      %s58 = sshll.u32 [#allocation5], 4
      %s59 = int_to_ptr.vmem [resolvable:$true] %s58
      %61 = dma.hbm_to_vmem [thread:$0]  %s11, 16, %s59, [#allocation6]
    $region49: #{tpu_custom_call.1} parent=1 // pred_fallthru
      _
    // Predicated region
    $region50: #{tpu_custom_call.1} parent=1 // pred_check
      _
    $region51: #{tpu_custom_call.1} parent=1 // pred_check_branch
      %63 = sbr.rel (0) target = $region53
    $region52: #{tpu_custom_call.1} parent=1 // pred_region
      _
    $region53: #{tpu_custom_call.1} parent=1 // pred_fallthru
      _
    // Predicated region
    $region54: #{tpu_custom_call.1} parent=1 // pred_check
      _
    $region55: #{tpu_custom_call.1} parent=1 // pred_check_branch
      %65 = sbr.rel (0) target = $region57
    $region56: #{tpu_custom_call.1} parent=1 // pred_region
      _
    $region57: #{tpu_custom_call.1} parent=1 // pred_fallthru
      _
    // Predicated region
    $region58: #{tpu_custom_call.1} parent=1 // pred_check
      _
    $region59: #{tpu_custom_call.1} parent=1 // pred_check_branch
      %67 = sbr.rel (0) target = $region61
    $region60: #{tpu_custom_call.1} parent=1 // pred_region
      %68 = dma.done [#allocation3], 16
    $region61: #{tpu_custom_call.1} parent=1 // pred_fallthru
      _
    // Predicated region
    $region62: #{tpu_custom_call.1} parent=1 // pred_check
      _
    $region63: #{tpu_custom_call.1} parent=1 // pred_check_branch
      %70 = sbr.rel (0) target = $region65
    $region64: #{tpu_custom_call.1} parent=1 // pred_region
      %71 = dma.done [#allocation6], 16
    $region65: #{tpu_custom_call.1} parent=1 // pred_fallthru
      _
    %v73 = vld [vmem:[%s0] sm:$0xff]
    %v74 = vld [vmem:[%s0 + $0x8] sm:$0xff]
    %v75 = vld [vmem:[%s1] sm:$0xff]
    %v76 = vld [vmem:[%s1 + $0x8] sm:$0xff]
    %v77 = vld [vmem:[%s2] sm:$0x1]
    %v78 = vld [vmem:[%s3] sm:$0x1]
    %vm79 = vcmask 261120
    %v80 = vsel %vm79, %v73, 0.0
    %81 = vadd.xlane.f32.xlu0 %v80
    %v82 = vpop.xlane.xlu0 %81
    %v83 = vsel %vm79, %v74, 0.0
    %84 = vadd.xlane.f32.xlu0 %v83
    %v85 = vpop.xlane.xlu0 %84
    %v86 = vrcp.pop 32.0
    %v87 = vmul.f32 %v82, %v86
    %v88 = vmul.f32 %v85, %v86
    %v89 = vsub.f32 %v73, %v87
    %v90 = vsub.f32 %v74, %v88
    %v91 = vmul.f32 %v89, %v89
    %v92 = vmul.f32 %v90, %v90
    %v93 = vsel %vm79, %v91, 0.0
    %94 = vadd.xlane.f32.xlu0 %v93
    %v95 = vpop.xlane.xlu0 %94
    %v96 = vsel %vm79, %v92, 0.0
    %97 = vadd.xlane.f32.xlu0 %v96
    %v98 = vpop.xlane.xlu0 %97
    %v99 = vmul.f32 %v95, %v86
    %v100 = vmul.f32 %v98, %v86
    %v101 = vadd.f32 %v99, 1e-05
    %v102 = vadd.f32 %v100, 1e-05
    %v103 = vrsqrt.pop %v101
    %v104 = vrsqrt.pop %v102
    %v105 = vmul.f32 %v89, %v103
    %v106 = vmul.f32 %v90, %v104
    %v108 = vlaneseq
    %v109 = vshrl.u32 %v108, 7
    %v110 = vsub.s32 0, %v109
    %v111 = vrot.slane %v77, %v110
    %v113 = vmul.f32 %v105, %v111
    %v114 = vmul.f32 %v106, %v111
    %v116 = vlaneseq
    %v117 = vshrl.u32 %v116, 7
    %v118 = vsub.s32 0, %v117
    %v119 = vrot.slane %v78, %v118
    %v121 = vadd.f32 %v113, %v119
    %v122 = vadd.f32 %v114, %v119
    %v123 = vpack.c.bf16 %v122, %v121
    %v124 = vld [vmem:[%s4] sm:$0xf]
    %v125 = vld [vmem:[%s4 + $0x4] sm:$0xf]
    %v126 = vld [vmem:[%s4 + $0x8] sm:$0xf]
    %v127 = vld [vmem:[%s4 + $0xc] sm:$0xf]
    %v128 = vld [vmem:[%s5] sm:$0x1]
    %v130 = vlaneseq
    %v131 = vshrl.u32 %v130, 7
    %v132 = vsub.s32 0, %v131
    %v133 = vrot.slane %v128, %v132
    %v139 = vunpack.c.l.b16 %v124
    %v140 = vunpack.c.l.b16 %v125
    %v141 = vunpack.c.l.b16 %v126
    %v142 = vunpack.c.l.b16 %v127
    %v143 = vpack.c.b16 %v140, %v139
    %v144 = vpack.c.b16 %v142, %v141
    %v148 = vsel %vm79, %v123, 0
    %150 = vmatprep.subr.bf16.mxu0 0
    %151 = vmatpush1.bf16.msra.mxu0 0
    %152 = vmatprep.subr.bf16.mxu0 0
    %153 = vmatpush1.bf16.msra.mxu0 0
    %154 = vmatprep.subr.bf16.mxu0 0
    %155 = vmatpush1.bf16.msra.mxu0 0
    %156 = vmatprep.subr.bf16.mxu0 0
    %157 = vmatpush1.bf16.msra.mxu0 0
    %158 = vmatprep.subr.bf16.mxu0 0
    %159 = vmatpush1.bf16.msra.mxu0 0
    %160 = vmatprep.subr.bf16.mxu0 0
    %161 = vmatpush1.bf16.msra.mxu0 0
    %162 = vmatprep.subr.bf16.mxu0 0
    %163 = vmatpush1.bf16.msra.mxu0 %v144
    %164 = vmatprep.subr.bf16.mxu0 0
    %165 = vmatpush1.bf16.msra.mxu0 %v143
    %166 = vmatprep.subr.bf16.mxu0 0
    %167 = vmatpush2.bf16.msra.mxu0 0
    %168 = vmatprep.subr.bf16.mxu0 0
    %169 = vmatpush2.bf16.msra.mxu0 0
    %170 = vmatprep.subr.bf16.mxu0 0
    %171 = vmatpush2.bf16.msra.mxu0 0
    %172 = vmatprep.subr.bf16.mxu0 0
    %173 = vmatpush2.bf16.msra.mxu0 0
    %174 = vmatprep.subr.bf16.mxu0 0
    %175 = vmatpush2.bf16.msra.mxu0 0
    %176 = vmatprep.subr.bf16.mxu0 0
    %177 = vmatpush2.bf16.msra.mxu0 0
    %178 = vmatprep.subr.bf16.mxu0 0
    %179 = vmatpush2.bf16.msra.mxu0 0
    %180 = vmatprep.subr.bf16.mxu0 0
    %181 = vmatpush2.bf16.msra.mxu0 0
    %182 = vmatprep.mubr.bf16.mxu0 0
    %183 = vmatmul.mubr.bf16.gmra.mxu0 %v148
    %v184 = vpop.f32.mrf.mxu0
    %v185 = vadd.f32 %v133, %v184
    %v186 = vpop.f32.mrf.mxu0
    %v187 = vpop.f32.mrf.mxu0
    %v188 = vadd.f32 %v133, %v187
    %v189 = vpop.f32.mrf.mxu0
    %190 = vdwg.mxu0
    %v191 = vpack.c.bf16 %v185, %v185
    %v192 = vpack.c.bf16 %v188, %v188
    %194 = vrot.lane.b32.xlu0 %v191, 96
    %v195 = vpop.permute.xlu0 %194
    %vm196 = vcmask 64512
    %v198 = vsel %vm196, %v191, 0
    %v201 = vsel %vm196, %v195, 0
    %203 = vmatprep.subr.bf16.mxu0 0
    %204 = vmatpush1.bf16.xpose.msra.mxu0 0
    %205 = vmatprep.subr.bf16.mxu0 0
    %206 = vmatpush1.bf16.xpose.msra.mxu0 0
    %207 = vmatprep.subr.bf16.mxu0 0
    %208 = vmatpush1.bf16.xpose.msra.mxu0 0
    %209 = vmatprep.subr.bf16.mxu0 0
    %210 = vmatpush1.bf16.xpose.msra.mxu0 0
    %211 = vmatprep.subr.bf16.mxu0 0
    %212 = vmatpush1.bf16.xpose.msra.mxu0 0
    %213 = vmatprep.subr.bf16.mxu0 0
    %214 = vmatpush1.bf16.xpose.msra.mxu0 0
    %215 = vmatprep.subr.bf16.mxu0 0
    %216 = vmatpush1.bf16.xpose.msra.mxu0 0
    %217 = vmatprep.subr.bf16.mxu0 0
    %218 = vmatpush1.bf16.xpose.msra.mxu0 %v201
    %219 = vmatprep.subr.bf16.mxu0 0
    %220 = vmatpush2.bf16.xpose.msra.mxu0 0
    %221 = vmatprep.subr.bf16.mxu0 0
    %222 = vmatpush2.bf16.xpose.msra.mxu0 0
    %223 = vmatprep.subr.bf16.mxu0 0
    %224 = vmatpush2.bf16.xpose.msra.mxu0 0
    %225 = vmatprep.subr.bf16.mxu0 0
    %226 = vmatpush2.bf16.xpose.msra.mxu0 0
    %227 = vmatprep.subr.bf16.mxu0 0
    %228 = vmatpush2.bf16.xpose.msra.mxu0 0
    %229 = vmatprep.subr.bf16.mxu0 0
    %230 = vmatpush2.bf16.xpose.msra.mxu0 0
    %231 = vmatprep.subr.bf16.mxu0 0
    %232 = vmatpush2.bf16.xpose.msra.mxu0 0
    %233 = vmatprep.subr.bf16.mxu0 0
    %234 = vmatpush2.bf16.xpose.msra.mxu0 0
    %235 = vmatprep.mubr.bf16.mxu0 0
    %236 = vmatmul.mubr.bf16.gmra.mxu0 %v198
    %v237 = vpop.f32.mrf.mxu0
    %v238 = vadd.f32 %v75, %v237
    %v239 = vpop.f32.mrf.mxu0
    %v240 = vpop.f32.mrf.mxu0
    %v241 = vpop.f32.mrf.mxu0
    %242 = vdwg.mxu0
    %244 = vrot.lane.b32.xlu0 %v192, 96
    %v245 = vpop.permute.xlu0 %244
    %v247 = vsel %vm196, %v192, 0
    %v250 = vsel %vm196, %v245, 0
    %252 = vmatprep.subr.bf16.mxu0 0
    %253 = vmatpush1.bf16.xpose.msra.mxu0 0
    %254 = vmatprep.subr.bf16.mxu0 0
    %255 = vmatpush1.bf16.xpose.msra.mxu0 0
    %256 = vmatprep.subr.bf16.mxu0 0
    %257 = vmatpush1.bf16.xpose.msra.mxu0 0
    %258 = vmatprep.subr.bf16.mxu0 0
    %259 = vmatpush1.bf16.xpose.msra.mxu0 0
    %260 = vmatprep.subr.bf16.mxu0 0
    %261 = vmatpush1.bf16.xpose.msra.mxu0 0
    %262 = vmatprep.subr.bf16.mxu0 0
    %263 = vmatpush1.bf16.xpose.msra.mxu0 0
    %264 = vmatprep.subr.bf16.mxu0 0
    %265 = vmatpush1.bf16.xpose.msra.mxu0 0
    %266 = vmatprep.subr.bf16.mxu0 0
    %267 = vmatpush1.bf16.xpose.msra.mxu0 %v250
    %268 = vmatprep.subr.bf16.mxu0 0
    %269 = vmatpush2.bf16.xpose.msra.mxu0 0
    %270 = vmatprep.subr.bf16.mxu0 0
    %271 = vmatpush2.bf16.xpose.msra.mxu0 0
    %272 = vmatprep.subr.bf16.mxu0 0
    %273 = vmatpush2.bf16.xpose.msra.mxu0 0
    %274 = vmatprep.subr.bf16.mxu0 0
    %275 = vmatpush2.bf16.xpose.msra.mxu0 0
    %276 = vmatprep.subr.bf16.mxu0 0
    %277 = vmatpush2.bf16.xpose.msra.mxu0 0
    %278 = vmatprep.subr.bf16.mxu0 0
    %279 = vmatpush2.bf16.xpose.msra.mxu0 0
    %280 = vmatprep.subr.bf16.mxu0 0
    %281 = vmatpush2.bf16.xpose.msra.mxu0 0
    %282 = vmatprep.subr.bf16.mxu0 0
    %283 = vmatpush2.bf16.xpose.msra.mxu0 0
    %284 = vmatprep.mubr.bf16.mxu0 0
    %285 = vmatmul.mubr.bf16.gmra.mxu0 %v247
    %v286 = vpop.f32.mrf.mxu0
    %v287 = vadd.f32 %v76, %v286
    %v288 = vpop.f32.mrf.mxu0
    %v289 = vpop.f32.mrf.mxu0
    %v290 = vpop.f32.mrf.mxu0
    %291 = vdwg.mxu0
    %v292 = vsel %vm196, %v238, -inf
    %293 = vmax.xlane.f32.xlu0 %v292
    %v294 = vpop.xlane.xlu0 %293
    %v295 = vsel %vm196, %v287, -inf
    %296 = vmax.xlane.f32.xlu0 %v295
    %v297 = vpop.xlane.xlu0 %296
    %v298 = vsub.f32 %v238, %v294
    %v299 = vsub.f32 %v287, %v297
    %v300 = vmul.f32 %v298, 1.442695
    %v301 = vpow.pop %v300
    %v302 = vmul.f32 %v299, 1.442695
    %v303 = vpow.pop %v302
    %v304 = vsel %vm196, %v301, 0.0
    %305 = vadd.xlane.f32.xlu0 %v304
    %v306 = vpop.xlane.xlu0 %305
    %v307 = vsel %vm196, %v303, 0.0
    %308 = vadd.xlane.f32.xlu0 %v307
    %v309 = vpop.xlane.xlu0 %308
    %v310 = vrcp.pop %v306
    %v311 = vrcp.pop %v309
    %v312 = vmul.f32 %v301, %v310
    %v313 = vmul.f32 %v303, %v311
    %v314 = vpack.c.bf16 %v312, %v312
    %v315 = vpack.c.bf16 %v313, %v313
    %316 = vrot.lane.b32.xlu0 %v191, 64
    %v317 = vpop.permute.xlu0 %316
    %v319 = vsel %vm196, %v314, 0
    %vm321 = vcmask 1043456
    %v323 = vsel %vm321, %v317, 0
    %325 = vmatprep.subr.bf16.mxu0 0
    %326 = vmatpush1.bf16.msra.mxu0 0
    %327 = vmatprep.subr.bf16.mxu0 0
    %328 = vmatpush1.bf16.msra.mxu0 0
    %329 = vmatprep.subr.bf16.mxu0 0
    %330 = vmatpush1.bf16.msra.mxu0 0
    %331 = vmatprep.subr.bf16.mxu0 0
    %332 = vmatpush1.bf16.msra.mxu0 0
    %333 = vmatprep.subr.bf16.mxu0 0
    %334 = vmatpush1.bf16.msra.mxu0 0
    %335 = vmatprep.subr.bf16.mxu0 0
    %336 = vmatpush1.bf16.msra.mxu0 0
    %337 = vmatprep.subr.bf16.mxu0 0
    %338 = vmatpush1.bf16.msra.mxu0 0
    %339 = vmatprep.subr.bf16.mxu0 0
    %340 = vmatpush1.bf16.msra.mxu0 %v323
    %341 = vmatprep.subr.bf16.mxu0 0
    %342 = vmatpush2.bf16.msra.mxu0 0
    %343 = vmatprep.subr.bf16.mxu0 0
    %344 = vmatpush2.bf16.msra.mxu0 0
    %345 = vmatprep.subr.bf16.mxu0 0
    %346 = vmatpush2.bf16.msra.mxu0 0
    %347 = vmatprep.subr.bf16.mxu0 0
    %348 = vmatpush2.bf16.msra.mxu0 0
    %349 = vmatprep.subr.bf16.mxu0 0
    %350 = vmatpush2.bf16.msra.mxu0 0
    %351 = vmatprep.subr.bf16.mxu0 0
    %352 = vmatpush2.bf16.msra.mxu0 0
    %353 = vmatprep.subr.bf16.mxu0 0
    %354 = vmatpush2.bf16.msra.mxu0 0
    %355 = vmatprep.subr.bf16.mxu0 0
    %356 = vmatpush2.bf16.msra.mxu0 0
    %357 = vmatprep.mubr.bf16.mxu0 0
    %358 = vmatmul.mubr.bf16.gmra.mxu0 %v319
    %v359 = vpop.f32.mrf.mxu0
    %v360 = vadd.f32 0.0, %v359
    %v361 = vpop.f32.mrf.mxu0
    %v362 = vpop.f32.mrf.mxu0
    %v363 = vpop.f32.mrf.mxu0
    %364 = vdwg.mxu0
    %365 = vrot.lane.b32.xlu0 %v192, 64
    %v366 = vpop.permute.xlu0 %365
    %v368 = vsel %vm196, %v315, 0
    %v371 = vsel %vm321, %v366, 0
    %373 = vmatprep.subr.bf16.mxu0 0
    %374 = vmatpush1.bf16.msra.mxu0 0
    %375 = vmatprep.subr.bf16.mxu0 0
    %376 = vmatpush1.bf16.msra.mxu0 0
    %377 = vmatprep.subr.bf16.mxu0 0
    %378 = vmatpush1.bf16.msra.mxu0 0
    %379 = vmatprep.subr.bf16.mxu0 0
    %380 = vmatpush1.bf16.msra.mxu0 0
    %381 = vmatprep.subr.bf16.mxu0 0
    %382 = vmatpush1.bf16.msra.mxu0 0
    %383 = vmatprep.subr.bf16.mxu0 0
    %384 = vmatpush1.bf16.msra.mxu0 0
    %385 = vmatprep.subr.bf16.mxu0 0
    %386 = vmatpush1.bf16.msra.mxu0 0
    %387 = vmatprep.subr.bf16.mxu0 0
    %388 = vmatpush1.bf16.msra.mxu0 %v371
    %389 = vmatprep.subr.bf16.mxu0 0
    %390 = vmatpush2.bf16.msra.mxu0 0
    %391 = vmatprep.subr.bf16.mxu0 0
    %392 = vmatpush2.bf16.msra.mxu0 0
    %393 = vmatprep.subr.bf16.mxu0 0
    %394 = vmatpush2.bf16.msra.mxu0 0
    %395 = vmatprep.subr.bf16.mxu0 0
    %396 = vmatpush2.bf16.msra.mxu0 0
    %397 = vmatprep.subr.bf16.mxu0 0
    %398 = vmatpush2.bf16.msra.mxu0 0
    %399 = vmatprep.subr.bf16.mxu0 0
    %400 = vmatpush2.bf16.msra.mxu0 0
    %401 = vmatprep.subr.bf16.mxu0 0
    %402 = vmatpush2.bf16.msra.mxu0 0
    %403 = vmatprep.subr.bf16.mxu0 0
    %404 = vmatpush2.bf16.msra.mxu0 0
    %405 = vmatprep.mubr.bf16.mxu0 0
    %406 = vmatmul.mubr.bf16.gmra.mxu0 %v368
    %v407 = vpop.f32.mrf.mxu0
    %v408 = vadd.f32 0.0, %v407
    %v409 = vpop.f32.mrf.mxu0
    %v410 = vpop.f32.mrf.mxu0
    %v411 = vpop.f32.mrf.mxu0
    %412 = vdwg.mxu0
    %v413 = vpack.c.bf16 %v408, %v360
    %v414 = vld [vmem:[%s6] sm:$0xf]
    %415 = vrot.lane.b32.xlu0 %v191, 120
    %v416 = vpop.permute.xlu0 %415
    %417 = vrot.lane.b32.xlu0 %v191, 88
    %v418 = vpop.permute.xlu0 %417
    %v420 = vsel %vm196, %v416, 0
    %v423 = vsel %vm196, %v418, 0
    %425 = vmatprep.subr.bf16.mxu0 0
    %426 = vmatpush1.bf16.xpose.msra.mxu0 0
    %427 = vmatprep.subr.bf16.mxu0 0
    %428 = vmatpush1.bf16.xpose.msra.mxu0 0
    %429 = vmatprep.subr.bf16.mxu0 0
    %430 = vmatpush1.bf16.xpose.msra.mxu0 0
    %431 = vmatprep.subr.bf16.mxu0 0
    %432 = vmatpush1.bf16.xpose.msra.mxu0 0
    %433 = vmatprep.subr.bf16.mxu0 0
    %434 = vmatpush1.bf16.xpose.msra.mxu0 0
    %435 = vmatprep.subr.bf16.mxu0 0
    %436 = vmatpush1.bf16.xpose.msra.mxu0 0
    %437 = vmatprep.subr.bf16.mxu0 0
    %438 = vmatpush1.bf16.xpose.msra.mxu0 0
    %439 = vmatprep.subr.bf16.mxu0 0
    %440 = vmatpush1.bf16.xpose.msra.mxu0 %v423
    %441 = vmatprep.subr.bf16.mxu0 0
    %442 = vmatpush2.bf16.xpose.msra.mxu0 0
    %443 = vmatprep.subr.bf16.mxu0 0
    %444 = vmatpush2.bf16.xpose.msra.mxu0 0
    %445 = vmatprep.subr.bf16.mxu0 0
    %446 = vmatpush2.bf16.xpose.msra.mxu0 0
    %447 = vmatprep.subr.bf16.mxu0 0
    %448 = vmatpush2.bf16.xpose.msra.mxu0 0
    %449 = vmatprep.subr.bf16.mxu0 0
    %450 = vmatpush2.bf16.xpose.msra.mxu0 0
    %451 = vmatprep.subr.bf16.mxu0 0
    %452 = vmatpush2.bf16.xpose.msra.mxu0 0
    %453 = vmatprep.subr.bf16.mxu0 0
    %454 = vmatpush2.bf16.xpose.msra.mxu0 0
    %455 = vmatprep.subr.bf16.mxu0 0
    %456 = vmatpush2.bf16.xpose.msra.mxu0 0
    %457 = vmatprep.mubr.bf16.mxu0 0
    %458 = vmatmul.mubr.bf16.gmra.mxu0 %v420
    %v459 = vpop.f32.mrf.mxu0
    %v460 = vadd.f32 %v75, %v459
    %v461 = vpop.f32.mrf.mxu0
    %v462 = vpop.f32.mrf.mxu0
    %v463 = vpop.f32.mrf.mxu0
    %464 = vdwg.mxu0
    %465 = vrot.lane.b32.xlu0 %v192, 120
    %v466 = vpop.permute.xlu0 %465
    %467 = vrot.lane.b32.xlu0 %v192, 88
    %v468 = vpop.permute.xlu0 %467
    %v470 = vsel %vm196, %v466, 0
    %v473 = vsel %vm196, %v468, 0
    %475 = vmatprep.subr.bf16.mxu0 0
    %476 = vmatpush1.bf16.xpose.msra.mxu0 0
    %477 = vmatprep.subr.bf16.mxu0 0
    %478 = vmatpush1.bf16.xpose.msra.mxu0 0
    %479 = vmatprep.subr.bf16.mxu0 0
    %480 = vmatpush1.bf16.xpose.msra.mxu0 0
    %481 = vmatprep.subr.bf16.mxu0 0
    %482 = vmatpush1.bf16.xpose.msra.mxu0 0
    %483 = vmatprep.subr.bf16.mxu0 0
    %484 = vmatpush1.bf16.xpose.msra.mxu0 0
    %485 = vmatprep.subr.bf16.mxu0 0
    %486 = vmatpush1.bf16.xpose.msra.mxu0 0
    %487 = vmatprep.subr.bf16.mxu0 0
    %488 = vmatpush1.bf16.xpose.msra.mxu0 0
    %489 = vmatprep.subr.bf16.mxu0 0
    %490 = vmatpush1.bf16.xpose.msra.mxu0 %v473
    %491 = vmatprep.subr.bf16.mxu0 0
    %492 = vmatpush2.bf16.xpose.msra.mxu0 0
    %493 = vmatprep.subr.bf16.mxu0 0
    %494 = vmatpush2.bf16.xpose.msra.mxu0 0
    %495 = vmatprep.subr.bf16.mxu0 0
    %496 = vmatpush2.bf16.xpose.msra.mxu0 0
    %497 = vmatprep.subr.bf16.mxu0 0
    %498 = vmatpush2.bf16.xpose.msra.mxu0 0
    %499 = vmatprep.subr.bf16.mxu0 0
    %500 = vmatpush2.bf16.xpose.msra.mxu0 0
    %501 = vmatprep.subr.bf16.mxu0 0
    %502 = vmatpush2.bf16.xpose.msra.mxu0 0
    %503 = vmatprep.subr.bf16.mxu0 0
    %504 = vmatpush2.bf16.xpose.msra.mxu0 0
    %505 = vmatprep.subr.bf16.mxu0 0
    %506 = vmatpush2.bf16.xpose.msra.mxu0 0
    %507 = vmatprep.mubr.bf16.mxu0 0
    %508 = vmatmul.mubr.bf16.gmra.mxu0 %v470
    %v509 = vpop.f32.mrf.mxu0
    %v510 = vadd.f32 %v76, %v509
    %v511 = vpop.f32.mrf.mxu0
    %v512 = vpop.f32.mrf.mxu0
    %v513 = vpop.f32.mrf.mxu0
    %514 = vdwg.mxu0
    %v515 = vsel %vm196, %v460, -inf
    %516 = vmax.xlane.f32.xlu0 %v515
    %v517 = vpop.xlane.xlu0 %516
    %v518 = vsel %vm196, %v510, -inf
    %519 = vmax.xlane.f32.xlu0 %v518
    %v520 = vpop.xlane.xlu0 %519
    %v521 = vsub.f32 %v460, %v517
    %v522 = vsub.f32 %v510, %v520
    %v523 = vmul.f32 %v521, 1.442695
    %v524 = vpow.pop %v523
    %v525 = vmul.f32 %v522, 1.442695
    %v526 = vpow.pop %v525
    %v527 = vsel %vm196, %v524, 0.0
    %528 = vadd.xlane.f32.xlu0 %v527
    %v529 = vpop.xlane.xlu0 %528
    %v530 = vsel %vm196, %v526, 0.0
    %531 = vadd.xlane.f32.xlu0 %v530
    %v532 = vpop.xlane.xlu0 %531
    %v533 = vrcp.pop %v529
    %v534 = vrcp.pop %v532
    %v535 = vmul.f32 %v524, %v533
    %v536 = vmul.f32 %v526, %v534
    %v537 = vpack.c.bf16 %v535, %v535
    %v538 = vpack.c.bf16 %v536, %v536
    %539 = vrot.lane.b32.xlu0 %v191, 56
    %v540 = vpop.permute.xlu0 %539
    %v542 = vsel %vm196, %v537, 0
    %v545 = vsel %vm321, %v540, 0
    %547 = vmatprep.subr.bf16.mxu0 0
    %548 = vmatpush1.bf16.msra.mxu0 0
    %549 = vmatprep.subr.bf16.mxu0 0
    %550 = vmatpush1.bf16.msra.mxu0 0
    %551 = vmatprep.subr.bf16.mxu0 0
    %552 = vmatpush1.bf16.msra.mxu0 0
    %553 = vmatprep.subr.bf16.mxu0 0
    %554 = vmatpush1.bf16.msra.mxu0 0
    %555 = vmatprep.subr.bf16.mxu0 0
    %556 = vmatpush1.bf16.msra.mxu0 0
    %557 = vmatprep.subr.bf16.mxu0 0
    %558 = vmatpush1.bf16.msra.mxu0 0
    %559 = vmatprep.subr.bf16.mxu0 0
    %560 = vmatpush1.bf16.msra.mxu0 0
    %561 = vmatprep.subr.bf16.mxu0 0
    %562 = vmatpush1.bf16.msra.mxu0 %v545
    %563 = vmatprep.subr.bf16.mxu0 0
    %564 = vmatpush2.bf16.msra.mxu0 0
    %565 = vmatprep.subr.bf16.mxu0 0
    %566 = vmatpush2.bf16.msra.mxu0 0
    %567 = vmatprep.subr.bf16.mxu0 0
    %568 = vmatpush2.bf16.msra.mxu0 0
    %569 = vmatprep.subr.bf16.mxu0 0
    %570 = vmatpush2.bf16.msra.mxu0 0
    %571 = vmatprep.subr.bf16.mxu0 0
    %572 = vmatpush2.bf16.msra.mxu0 0
    %573 = vmatprep.subr.bf16.mxu0 0
    %574 = vmatpush2.bf16.msra.mxu0 0
    %575 = vmatprep.subr.bf16.mxu0 0
    %576 = vmatpush2.bf16.msra.mxu0 0
    %577 = vmatprep.subr.bf16.mxu0 0
    %578 = vmatpush2.bf16.msra.mxu0 0
    %579 = vmatprep.mubr.bf16.mxu0 0
    %580 = vmatmul.mubr.bf16.gmra.mxu0 %v542
    %v581 = vpop.f32.mrf.mxu0
    %v582 = vadd.f32 0.0, %v581
    %v583 = vpop.f32.mrf.mxu0
    %v584 = vpop.f32.mrf.mxu0
    %v585 = vpop.f32.mrf.mxu0
    %586 = vdwg.mxu0
    %587 = vrot.lane.b32.xlu0 %v192, 56
    %v588 = vpop.permute.xlu0 %587
    %v590 = vsel %vm196, %v538, 0
    %v593 = vsel %vm321, %v588, 0
    %595 = vmatprep.subr.bf16.mxu0 0
    %596 = vmatpush1.bf16.msra.mxu0 0
    %597 = vmatprep.subr.bf16.mxu0 0
    %598 = vmatpush1.bf16.msra.mxu0 0
    %599 = vmatprep.subr.bf16.mxu0 0
    %600 = vmatpush1.bf16.msra.mxu0 0
    %601 = vmatprep.subr.bf16.mxu0 0
    %602 = vmatpush1.bf16.msra.mxu0 0
    %603 = vmatprep.subr.bf16.mxu0 0
    %604 = vmatpush1.bf16.msra.mxu0 0
    %605 = vmatprep.subr.bf16.mxu0 0
    %606 = vmatpush1.bf16.msra.mxu0 0
    %607 = vmatprep.subr.bf16.mxu0 0
    %608 = vmatpush1.bf16.msra.mxu0 0
    %609 = vmatprep.subr.bf16.mxu0 0
    %610 = vmatpush1.bf16.msra.mxu0 %v593
    %611 = vmatprep.subr.bf16.mxu0 0
    %612 = vmatpush2.bf16.msra.mxu0 0
    %613 = vmatprep.subr.bf16.mxu0 0
    %614 = vmatpush2.bf16.msra.mxu0 0
    %615 = vmatprep.subr.bf16.mxu0 0
    %616 = vmatpush2.bf16.msra.mxu0 0
    %617 = vmatprep.subr.bf16.mxu0 0
    %618 = vmatpush2.bf16.msra.mxu0 0
    %619 = vmatprep.subr.bf16.mxu0 0
    %620 = vmatpush2.bf16.msra.mxu0 0
    %621 = vmatprep.subr.bf16.mxu0 0
    %622 = vmatpush2.bf16.msra.mxu0 0
    %623 = vmatprep.subr.bf16.mxu0 0
    %624 = vmatpush2.bf16.msra.mxu0 0
    %625 = vmatprep.subr.bf16.mxu0 0
    %626 = vmatpush2.bf16.msra.mxu0 0
    %627 = vmatprep.mubr.bf16.mxu0 0
    %628 = vmatmul.mubr.bf16.gmra.mxu0 %v590
    %v629 = vpop.f32.mrf.mxu0
    %v630 = vadd.f32 0.0, %v629
    %v631 = vpop.f32.mrf.mxu0
    %v632 = vpop.f32.mrf.mxu0
    %v633 = vpop.f32.mrf.mxu0
    %634 = vdwg.mxu0
    %v635 = vpack.c.bf16 %v630, %v582
    %v636 = vld [vmem:[%s6 + $0x4] sm:$0xf]
    %v638 = vsel %vm196, %v635, 0
    %v641 = vsel %vm321, %v636, 0
    %643 = vmatprep.subr.bf16.mxu0 0
    %644 = vmatpush1.bf16.msra.mxu0 0
    %645 = vmatprep.subr.bf16.mxu0 0
    %646 = vmatpush1.bf16.msra.mxu0 0
    %647 = vmatprep.subr.bf16.mxu0 0
    %648 = vmatpush1.bf16.msra.mxu0 0
    %649 = vmatprep.subr.bf16.mxu0 0
    %650 = vmatpush1.bf16.msra.mxu0 0
    %651 = vmatprep.subr.bf16.mxu0 0
    %652 = vmatpush1.bf16.msra.mxu0 0
    %653 = vmatprep.subr.bf16.mxu0 0
    %654 = vmatpush1.bf16.msra.mxu0 0
    %655 = vmatprep.subr.bf16.mxu0 0
    %656 = vmatpush1.bf16.msra.mxu0 0
    %657 = vmatprep.subr.bf16.mxu0 0
    %658 = vmatpush1.bf16.msra.mxu0 %v641
    %659 = vmatprep.subr.bf16.mxu0 0
    %660 = vmatpush2.bf16.msra.mxu0 0
    %661 = vmatprep.subr.bf16.mxu0 0
    %662 = vmatpush2.bf16.msra.mxu0 0
    %663 = vmatprep.subr.bf16.mxu0 0
    %664 = vmatpush2.bf16.msra.mxu0 0
    %665 = vmatprep.subr.bf16.mxu0 0
    %666 = vmatpush2.bf16.msra.mxu0 0
    %667 = vmatprep.subr.bf16.mxu0 0
    %668 = vmatpush2.bf16.msra.mxu0 0
    %669 = vmatprep.subr.bf16.mxu0 0
    %670 = vmatpush2.bf16.msra.mxu0 0
    %671 = vmatprep.subr.bf16.mxu0 0
    %672 = vmatpush2.bf16.msra.mxu0 0
    %673 = vmatprep.subr.bf16.mxu0 0
    %674 = vmatpush2.bf16.msra.mxu0 0
    %675 = vmatprep.mubr.bf16.mxu0 0
    %676 = vmatmul.mubr.bf16.gmra.mxu0 %v638
    %v677 = vpop.f32.mrf.mxu0
    %v678 = vadd.f32 0.0, %v677
    %v679 = vpop.f32.mrf.mxu0
    %v680 = vpop.f32.mrf.mxu0
    %v681 = vadd.f32 0.0, %v680
    %v682 = vpop.f32.mrf.mxu0
    %683 = vdwg.mxu0
    %v685 = vsel %vm196, %v413, 0
    %v688 = vsel %vm321, %v414, 0
    %690 = vmatprep.subr.bf16.mxu0 0
    %691 = vmatpush1.bf16.msra.mxu0 0
    %692 = vmatprep.subr.bf16.mxu0 0
    %693 = vmatpush1.bf16.msra.mxu0 0
    %694 = vmatprep.subr.bf16.mxu0 0
    %695 = vmatpush1.bf16.msra.mxu0 0
    %696 = vmatprep.subr.bf16.mxu0 0
    %697 = vmatpush1.bf16.msra.mxu0 0
    %698 = vmatprep.subr.bf16.mxu0 0
    %699 = vmatpush1.bf16.msra.mxu0 0
    %700 = vmatprep.subr.bf16.mxu0 0
    %701 = vmatpush1.bf16.msra.mxu0 0
    %702 = vmatprep.subr.bf16.mxu0 0
    %703 = vmatpush1.bf16.msra.mxu0 0
    %704 = vmatprep.subr.bf16.mxu0 0
    %705 = vmatpush1.bf16.msra.mxu0 %v688
    %706 = vmatprep.subr.bf16.mxu0 0
    %707 = vmatpush2.bf16.msra.mxu0 0
    %708 = vmatprep.subr.bf16.mxu0 0
    %709 = vmatpush2.bf16.msra.mxu0 0
    %710 = vmatprep.subr.bf16.mxu0 0
    %711 = vmatpush2.bf16.msra.mxu0 0
    %712 = vmatprep.subr.bf16.mxu0 0
    %713 = vmatpush2.bf16.msra.mxu0 0
    %714 = vmatprep.subr.bf16.mxu0 0
    %715 = vmatpush2.bf16.msra.mxu0 0
    %716 = vmatprep.subr.bf16.mxu0 0
    %717 = vmatpush2.bf16.msra.mxu0 0
    %718 = vmatprep.subr.bf16.mxu0 0
    %719 = vmatpush2.bf16.msra.mxu0 0
    %720 = vmatprep.subr.bf16.mxu0 0
    %721 = vmatpush2.bf16.msra.mxu0 0
    %722 = vmatprep.mubr.bf16.mxu0 0
    %723 = vmatmul.mubr.bf16.gmra.mxu0 %v685
    %v724 = vpop.f32.mrf.mxu0
    %v725 = vadd.f32 %v678, %v724
    %v726 = vpop.f32.mrf.mxu0
    %v727 = vpop.f32.mrf.mxu0
    %v728 = vadd.f32 %v681, %v727
    %v729 = vpop.f32.mrf.mxu0
    %730 = vdwg.mxu0
    %731 = vrot.lane.b32.xlu0 %v191, 112
    %v732 = vpop.permute.xlu0 %731
    %733 = vrot.lane.b32.xlu0 %v191, 80
    %v734 = vpop.permute.xlu0 %733
    %v736 = vsel %vm196, %v732, 0
    %v739 = vsel %vm196, %v734, 0
    %741 = vmatprep.subr.bf16.mxu0 0
    %742 = vmatpush1.bf16.xpose.msra.mxu0 0
    %743 = vmatprep.subr.bf16.mxu0 0
    %744 = vmatpush1.bf16.xpose.msra.mxu0 0
    %745 = vmatprep.subr.bf16.mxu0 0
    %746 = vmatpush1.bf16.xpose.msra.mxu0 0
    %747 = vmatprep.subr.bf16.mxu0 0
    %748 = vmatpush1.bf16.xpose.msra.mxu0 0
    %749 = vmatprep.subr.bf16.mxu0 0
    %750 = vmatpush1.bf16.xpose.msra.mxu0 0
    %751 = vmatprep.subr.bf16.mxu0 0
    %752 = vmatpush1.bf16.xpose.msra.mxu0 0
    %753 = vmatprep.subr.bf16.mxu0 0
    %754 = vmatpush1.bf16.xpose.msra.mxu0 0
    %755 = vmatprep.subr.bf16.mxu0 0
    %756 = vmatpush1.bf16.xpose.msra.mxu0 %v739
    %757 = vmatprep.subr.bf16.mxu0 0
    %758 = vmatpush2.bf16.xpose.msra.mxu0 0
    %759 = vmatprep.subr.bf16.mxu0 0
    %760 = vmatpush2.bf16.xpose.msra.mxu0 0
    %761 = vmatprep.subr.bf16.mxu0 0
    %762 = vmatpush2.bf16.xpose.msra.mxu0 0
    %763 = vmatprep.subr.bf16.mxu0 0
    %764 = vmatpush2.bf16.xpose.msra.mxu0 0
    %765 = vmatprep.subr.bf16.mxu0 0
    %766 = vmatpush2.bf16.xpose.msra.mxu0 0
    %767 = vmatprep.subr.bf16.mxu0 0
    %768 = vmatpush2.bf16.xpose.msra.mxu0 0
    %769 = vmatprep.subr.bf16.mxu0 0
    %770 = vmatpush2.bf16.xpose.msra.mxu0 0
    %771 = vmatprep.subr.bf16.mxu0 0
    %772 = vmatpush2.bf16.xpose.msra.mxu0 0
    %773 = vmatprep.mubr.bf16.mxu0 0
    %774 = vmatmul.mubr.bf16.gmra.mxu0 %v736
    %v775 = vpop.f32.mrf.mxu0
    %v776 = vadd.f32 %v75, %v775
    %v777 = vpop.f32.mrf.mxu0
    %v778 = vpop.f32.mrf.mxu0
    %v779 = vpop.f32.mrf.mxu0
    %780 = vdwg.mxu0
    %781 = vrot.lane.b32.xlu0 %v192, 112
    %v782 = vpop.permute.xlu0 %781
    %783 = vrot.lane.b32.xlu0 %v192, 80
    %v784 = vpop.permute.xlu0 %783
    %v786 = vsel %vm196, %v782, 0
    %v789 = vsel %vm196, %v784, 0
    %791 = vmatprep.subr.bf16.mxu0 0
    %792 = vmatpush1.bf16.xpose.msra.mxu0 0
    %793 = vmatprep.subr.bf16.mxu0 0
    %794 = vmatpush1.bf16.xpose.msra.mxu0 0
    %795 = vmatprep.subr.bf16.mxu0 0
    %796 = vmatpush1.bf16.xpose.msra.mxu0 0
    %797 = vmatprep.subr.bf16.mxu0 0
    %798 = vmatpush1.bf16.xpose.msra.mxu0 0
    %799 = vmatprep.subr.bf16.mxu0 0
    %800 = vmatpush1.bf16.xpose.msra.mxu0 0
    %801 = vmatprep.subr.bf16.mxu0 0
    %802 = vmatpush1.bf16.xpose.msra.mxu0 0
    %803 = vmatprep.subr.bf16.mxu0 0
    %804 = vmatpush1.bf16.xpose.msra.mxu0 0
    %805 = vmatprep.subr.bf16.mxu0 0
    %806 = vmatpush1.bf16.xpose.msra.mxu0 %v789
    %807 = vmatprep.subr.bf16.mxu0 0
    %808 = vmatpush2.bf16.xpose.msra.mxu0 0
    %809 = vmatprep.subr.bf16.mxu0 0
    %810 = vmatpush2.bf16.xpose.msra.mxu0 0
    %811 = vmatprep.subr.bf16.mxu0 0
    %812 = vmatpush2.bf16.xpose.msra.mxu0 0
    %813 = vmatprep.subr.bf16.mxu0 0
    %814 = vmatpush2.bf16.xpose.msra.mxu0 0
    %815 = vmatprep.subr.bf16.mxu0 0
    %816 = vmatpush2.bf16.xpose.msra.mxu0 0
    %817 = vmatprep.subr.bf16.mxu0 0
    %818 = vmatpush2.bf16.xpose.msra.mxu0 0
    %819 = vmatprep.subr.bf16.mxu0 0
    %820 = vmatpush2.bf16.xpose.msra.mxu0 0
    %821 = vmatprep.subr.bf16.mxu0 0
    %822 = vmatpush2.bf16.xpose.msra.mxu0 0
    %823 = vmatprep.mubr.bf16.mxu0 0
    %824 = vmatmul.mubr.bf16.gmra.mxu0 %v786
    %v825 = vpop.f32.mrf.mxu0
    %v826 = vadd.f32 %v76, %v825
    %v827 = vpop.f32.mrf.mxu0
    %v828 = vpop.f32.mrf.mxu0
    %v829 = vpop.f32.mrf.mxu0
    %830 = vdwg.mxu0
    %v831 = vsel %vm196, %v776, -inf
    %832 = vmax.xlane.f32.xlu0 %v831
    %v833 = vpop.xlane.xlu0 %832
    %v834 = vsel %vm196, %v826, -inf
    %835 = vmax.xlane.f32.xlu0 %v834
    %v836 = vpop.xlane.xlu0 %835
    %v837 = vsub.f32 %v776, %v833
    %v838 = vsub.f32 %v826, %v836
    %v839 = vmul.f32 %v837, 1.442695
    %v840 = vpow.pop %v839
    %v841 = vmul.f32 %v838, 1.442695
    %v842 = vpow.pop %v841
    %v843 = vsel %vm196, %v840, 0.0
    %844 = vadd.xlane.f32.xlu0 %v843
    %v845 = vpop.xlane.xlu0 %844
    %v846 = vsel %vm196, %v842, 0.0
    %847 = vadd.xlane.f32.xlu0 %v846
    %v848 = vpop.xlane.xlu0 %847
    %v849 = vrcp.pop %v845
    %v850 = vrcp.pop %v848
    %v851 = vmul.f32 %v840, %v849
    %v852 = vmul.f32 %v842, %v850
    %v853 = vpack.c.bf16 %v851, %v851
    %v854 = vpack.c.bf16 %v852, %v852
    %855 = vrot.lane.b32.xlu0 %v191, 48
    %v856 = vpop.permute.xlu0 %855
    %v858 = vsel %vm196, %v853, 0
    %v861 = vsel %vm321, %v856, 0
    %863 = vmatprep.subr.bf16.mxu0 0
    %864 = vmatpush1.bf16.msra.mxu0 0
    %865 = vmatprep.subr.bf16.mxu0 0
    %866 = vmatpush1.bf16.msra.mxu0 0
    %867 = vmatprep.subr.bf16.mxu0 0
    %868 = vmatpush1.bf16.msra.mxu0 0
    %869 = vmatprep.subr.bf16.mxu0 0
    %870 = vmatpush1.bf16.msra.mxu0 0
    %871 = vmatprep.subr.bf16.mxu0 0
    %872 = vmatpush1.bf16.msra.mxu0 0
    %873 = vmatprep.subr.bf16.mxu0 0
    %874 = vmatpush1.bf16.msra.mxu0 0
    %875 = vmatprep.subr.bf16.mxu0 0
    %876 = vmatpush1.bf16.msra.mxu0 0
    %877 = vmatprep.subr.bf16.mxu0 0
    %878 = vmatpush1.bf16.msra.mxu0 %v861
    %879 = vmatprep.subr.bf16.mxu0 0
    %880 = vmatpush2.bf16.msra.mxu0 0
    %881 = vmatprep.subr.bf16.mxu0 0
    %882 = vmatpush2.bf16.msra.mxu0 0
    %883 = vmatprep.subr.bf16.mxu0 0
    %884 = vmatpush2.bf16.msra.mxu0 0
    %885 = vmatprep.subr.bf16.mxu0 0
    %886 = vmatpush2.bf16.msra.mxu0 0
    %887 = vmatprep.subr.bf16.mxu0 0
    %888 = vmatpush2.bf16.msra.mxu0 0
    %889 = vmatprep.subr.bf16.mxu0 0
    %890 = vmatpush2.bf16.msra.mxu0 0
    %891 = vmatprep.subr.bf16.mxu0 0
    %892 = vmatpush2.bf16.msra.mxu0 0
    %893 = vmatprep.subr.bf16.mxu0 0
    %894 = vmatpush2.bf16.msra.mxu0 0
    %895 = vmatprep.mubr.bf16.mxu0 0
    %896 = vmatmul.mubr.bf16.gmra.mxu0 %v858
    %v897 = vpop.f32.mrf.mxu0
    %v898 = vadd.f32 0.0, %v897
    %v899 = vpop.f32.mrf.mxu0
    %v900 = vpop.f32.mrf.mxu0
    %v901 = vpop.f32.mrf.mxu0
    %902 = vdwg.mxu0
    %903 = vrot.lane.b32.xlu0 %v192, 48
    %v904 = vpop.permute.xlu0 %903
    %v906 = vsel %vm196, %v854, 0
    %v909 = vsel %vm321, %v904, 0
    %911 = vmatprep.subr.bf16.mxu0 0
    %912 = vmatpush1.bf16.msra.mxu0 0
    %913 = vmatprep.subr.bf16.mxu0 0
    %914 = vmatpush1.bf16.msra.mxu0 0
    %915 = vmatprep.subr.bf16.mxu0 0
    %916 = vmatpush1.bf16.msra.mxu0 0
    %917 = vmatprep.subr.bf16.mxu0 0
    %918 = vmatpush1.bf16.msra.mxu0 0
    %919 = vmatprep.subr.bf16.mxu0 0
    %920 = vmatpush1.bf16.msra.mxu0 0
    %921 = vmatprep.subr.bf16.mxu0 0
    %922 = vmatpush1.bf16.msra.mxu0 0
    %923 = vmatprep.subr.bf16.mxu0 0
    %924 = vmatpush1.bf16.msra.mxu0 0
    %925 = vmatprep.subr.bf16.mxu0 0
    %926 = vmatpush1.bf16.msra.mxu0 %v909
    %927 = vmatprep.subr.bf16.mxu0 0
    %928 = vmatpush2.bf16.msra.mxu0 0
    %929 = vmatprep.subr.bf16.mxu0 0
    %930 = vmatpush2.bf16.msra.mxu0 0
    %931 = vmatprep.subr.bf16.mxu0 0
    %932 = vmatpush2.bf16.msra.mxu0 0
    %933 = vmatprep.subr.bf16.mxu0 0
    %934 = vmatpush2.bf16.msra.mxu0 0
    %935 = vmatprep.subr.bf16.mxu0 0
    %936 = vmatpush2.bf16.msra.mxu0 0
    %937 = vmatprep.subr.bf16.mxu0 0
    %938 = vmatpush2.bf16.msra.mxu0 0
    %939 = vmatprep.subr.bf16.mxu0 0
    %940 = vmatpush2.bf16.msra.mxu0 0
    %941 = vmatprep.subr.bf16.mxu0 0
    %942 = vmatpush2.bf16.msra.mxu0 0
    %943 = vmatprep.mubr.bf16.mxu0 0
    %944 = vmatmul.mubr.bf16.gmra.mxu0 %v906
    %v945 = vpop.f32.mrf.mxu0
    %v946 = vadd.f32 0.0, %v945
    %v947 = vpop.f32.mrf.mxu0
    %v948 = vpop.f32.mrf.mxu0
    %v949 = vpop.f32.mrf.mxu0
    %950 = vdwg.mxu0
    %v951 = vpack.c.bf16 %v946, %v898
    %v952 = vld [vmem:[%s6 + $0x8] sm:$0xf]
    %v954 = vsel %vm196, %v951, 0
    %v957 = vsel %vm321, %v952, 0
    %959 = vmatprep.subr.bf16.mxu0 0
    %960 = vmatpush1.bf16.msra.mxu0 0
    %961 = vmatprep.subr.bf16.mxu0 0
    %962 = vmatpush1.bf16.msra.mxu0 0
    %963 = vmatprep.subr.bf16.mxu0 0
    %964 = vmatpush1.bf16.msra.mxu0 0
    %965 = vmatprep.subr.bf16.mxu0 0
    %966 = vmatpush1.bf16.msra.mxu0 0
    %967 = vmatprep.subr.bf16.mxu0 0
    %968 = vmatpush1.bf16.msra.mxu0 0
    %969 = vmatprep.subr.bf16.mxu0 0
    %970 = vmatpush1.bf16.msra.mxu0 0
    %971 = vmatprep.subr.bf16.mxu0 0
    %972 = vmatpush1.bf16.msra.mxu0 0
    %973 = vmatprep.subr.bf16.mxu0 0
    %974 = vmatpush1.bf16.msra.mxu0 %v957
    %975 = vmatprep.subr.bf16.mxu0 0
    %976 = vmatpush2.bf16.msra.mxu0 0
    %977 = vmatprep.subr.bf16.mxu0 0
    %978 = vmatpush2.bf16.msra.mxu0 0
    %979 = vmatprep.subr.bf16.mxu0 0
    %980 = vmatpush2.bf16.msra.mxu0 0
    %981 = vmatprep.subr.bf16.mxu0 0
    %982 = vmatpush2.bf16.msra.mxu0 0
    %983 = vmatprep.subr.bf16.mxu0 0
    %984 = vmatpush2.bf16.msra.mxu0 0
    %985 = vmatprep.subr.bf16.mxu0 0
    %986 = vmatpush2.bf16.msra.mxu0 0
    %987 = vmatprep.subr.bf16.mxu0 0
    %988 = vmatpush2.bf16.msra.mxu0 0
    %989 = vmatprep.subr.bf16.mxu0 0
    %990 = vmatpush2.bf16.msra.mxu0 0
    %991 = vmatprep.mubr.bf16.mxu0 0
    %992 = vmatmul.mubr.bf16.gmra.mxu0 %v954
    %v993 = vpop.f32.mrf.mxu0
    %v994 = vadd.f32 0.0, %v993
    %v995 = vpop.f32.mrf.mxu0
    %v996 = vpop.f32.mrf.mxu0
    %v997 = vadd.f32 0.0, %v996
    %v998 = vpop.f32.mrf.mxu0
    %999 = vdwg.mxu0
    %v1000 = vadd.f32 %v725, %v994
    %v1001 = vadd.f32 %v728, %v997
    %1002 = vrot.lane.b32.xlu0 %v191, 104
    %v1003 = vpop.permute.xlu0 %1002
    %1004 = vrot.lane.b32.xlu0 %v191, 72
    %v1005 = vpop.permute.xlu0 %1004
    %v1007 = vsel %vm196, %v1003, 0
    %v1010 = vsel %vm196, %v1005, 0
    %1012 = vmatprep.subr.bf16.mxu0 0
    %1013 = vmatpush1.bf16.xpose.msra.mxu0 0
    %1014 = vmatprep.subr.bf16.mxu0 0
    %1015 = vmatpush1.bf16.xpose.msra.mxu0 0
    %1016 = vmatprep.subr.bf16.mxu0 0
    %1017 = vmatpush1.bf16.xpose.msra.mxu0 0
    %1018 = vmatprep.subr.bf16.mxu0 0
    %1019 = vmatpush1.bf16.xpose.msra.mxu0 0
    %1020 = vmatprep.subr.bf16.mxu0 0
    %1021 = vmatpush1.bf16.xpose.msra.mxu0 0
    %1022 = vmatprep.subr.bf16.mxu0 0
    %1023 = vmatpush1.bf16.xpose.msra.mxu0 0
    %1024 = vmatprep.subr.bf16.mxu0 0
    %1025 = vmatpush1.bf16.xpose.msra.mxu0 0
    %1026 = vmatprep.subr.bf16.mxu0 0
    %1027 = vmatpush1.bf16.xpose.msra.mxu0 %v1010
    %1028 = vmatprep.subr.bf16.mxu0 0
    %1029 = vmatpush2.bf16.xpose.msra.mxu0 0
    %1030 = vmatprep.subr.bf16.mxu0 0
    %1031 = vmatpush2.bf16.xpose.msra.mxu0 0
    %1032 = vmatprep.subr.bf16.mxu0 0
    %1033 = vmatpush2.bf16.xpose.msra.mxu0 0
    %1034 = vmatprep.subr.bf16.mxu0 0
    %1035 = vmatpush2.bf16.xpose.msra.mxu0 0
    %1036 = vmatprep.subr.bf16.mxu0 0
    %1037 = vmatpush2.bf16.xpose.msra.mxu0 0
    %1038 = vmatprep.subr.bf16.mxu0 0
    %1039 = vmatpush2.bf16.xpose.msra.mxu0 0
    %1040 = vmatprep.subr.bf16.mxu0 0
    %1041 = vmatpush2.bf16.xpose.msra.mxu0 0
    %1042 = vmatprep.subr.bf16.mxu0 0
    %1043 = vmatpush2.bf16.xpose.msra.mxu0 0
    %1044 = vmatprep.mubr.bf16.mxu0 0
    %1045 = vmatmul.mubr.bf16.gmra.mxu0 %v1007
    %v1046 = vpop.f32.mrf.mxu0
    %v1047 = vadd.f32 %v75, %v1046
    %v1048 = vpop.f32.mrf.mxu0
    %v1049 = vpop.f32.mrf.mxu0
    %v1050 = vpop.f32.mrf.mxu0
    %1051 = vdwg.mxu0
    %1052 = vrot.lane.b32.xlu0 %v192, 104
    %v1053 = vpop.permute.xlu0 %1052
    %1054 = vrot.lane.b32.xlu0 %v192, 72
    %v1055 = vpop.permute.xlu0 %1054
    %v1057 = vsel %vm196, %v1053, 0
    %v1060 = vsel %vm196, %v1055, 0
    %1062 = vmatprep.subr.bf16.mxu0 0
    %1063 = vmatpush1.bf16.xpose.msra.mxu0 0
    %1064 = vmatprep.subr.bf16.mxu0 0
    %1065 = vmatpush1.bf16.xpose.msra.mxu0 0
    %1066 = vmatprep.subr.bf16.mxu0 0
    %1067 = vmatpush1.bf16.xpose.msra.mxu0 0
    %1068 = vmatprep.subr.bf16.mxu0 0
    %1069 = vmatpush1.bf16.xpose.msra.mxu0 0
    %1070 = vmatprep.subr.bf16.mxu0 0
    %1071 = vmatpush1.bf16.xpose.msra.mxu0 0
    %1072 = vmatprep.subr.bf16.mxu0 0
    %1073 = vmatpush1.bf16.xpose.msra.mxu0 0
    %1074 = vmatprep.subr.bf16.mxu0 0
    %1075 = vmatpush1.bf16.xpose.msra.mxu0 0
    %1076 = vmatprep.subr.bf16.mxu0 0
    %1077 = vmatpush1.bf16.xpose.msra.mxu0 %v1060
    %1078 = vmatprep.subr.bf16.mxu0 0
    %1079 = vmatpush2.bf16.xpose.msra.mxu0 0
    %1080 = vmatprep.subr.bf16.mxu0 0
    %1081 = vmatpush2.bf16.xpose.msra.mxu0 0
    %1082 = vmatprep.subr.bf16.mxu0 0
    %1083 = vmatpush2.bf16.xpose.msra.mxu0 0
    %1084 = vmatprep.subr.bf16.mxu0 0
    %1085 = vmatpush2.bf16.xpose.msra.mxu0 0
    %1086 = vmatprep.subr.bf16.mxu0 0
    %1087 = vmatpush2.bf16.xpose.msra.mxu0 0
    %1088 = vmatprep.subr.bf16.mxu0 0
    %1089 = vmatpush2.bf16.xpose.msra.mxu0 0
    %1090 = vmatprep.subr.bf16.mxu0 0
    %1091 = vmatpush2.bf16.xpose.msra.mxu0 0
    %1092 = vmatprep.subr.bf16.mxu0 0
    %1093 = vmatpush2.bf16.xpose.msra.mxu0 0
    %1094 = vmatprep.mubr.bf16.mxu0 0
    %1095 = vmatmul.mubr.bf16.gmra.mxu0 %v1057
    %v1096 = vpop.f32.mrf.mxu0
    %v1097 = vadd.f32 %v76, %v1096
    %v1098 = vpop.f32.mrf.mxu0
    %v1099 = vpop.f32.mrf.mxu0
    %v1100 = vpop.f32.mrf.mxu0
    %1101 = vdwg.mxu0
    %v1102 = vsel %vm196, %v1047, -inf
    %1103 = vmax.xlane.f32.xlu0 %v1102
    %v1104 = vpop.xlane.xlu0 %1103
    %v1105 = vsel %vm196, %v1097, -inf
    %1106 = vmax.xlane.f32.xlu0 %v1105
    %v1107 = vpop.xlane.xlu0 %1106
    %v1108 = vsub.f32 %v1047, %v1104
    %v1109 = vsub.f32 %v1097, %v1107
    %v1110 = vmul.f32 %v1108, 1.442695
    %v1111 = vpow.pop %v1110
    %v1112 = vmul.f32 %v1109, 1.442695
    %v1113 = vpow.pop %v1112
    %v1114 = vsel %vm196, %v1111, 0.0
    %1115 = vadd.xlane.f32.xlu0 %v1114
    %v1116 = vpop.xlane.xlu0 %1115
    %v1117 = vsel %vm196, %v1113, 0.0
    %1118 = vadd.xlane.f32.xlu0 %v1117
    %v1119 = vpop.xlane.xlu0 %1118
    %v1120 = vrcp.pop %v1116
    %v1121 = vrcp.pop %v1119
    %v1122 = vmul.f32 %v1111, %v1120
    %v1123 = vmul.f32 %v1113, %v1121
    %v1124 = vpack.c.bf16 %v1122, %v1122
    %v1125 = vpack.c.bf16 %v1123, %v1123
    %1126 = vrot.lane.b32.xlu0 %v191, 40
    %v1127 = vpop.permute.xlu0 %1126
    %v1129 = vsel %vm196, %v1124, 0
    %v1132 = vsel %vm321, %v1127, 0
    %1134 = vmatprep.subr.bf16.mxu0 0
    %1135 = vmatpush1.bf16.msra.mxu0 0
    %1136 = vmatprep.subr.bf16.mxu0 0
    %1137 = vmatpush1.bf16.msra.mxu0 0
    %1138 = vmatprep.subr.bf16.mxu0 0
    %1139 = vmatpush1.bf16.msra.mxu0 0
    %1140 = vmatprep.subr.bf16.mxu0 0
    %1141 = vmatpush1.bf16.msra.mxu0 0
    %1142 = vmatprep.subr.bf16.mxu0 0
    %1143 = vmatpush1.bf16.msra.mxu0 0
    %1144 = vmatprep.subr.bf16.mxu0 0
    %1145 = vmatpush1.bf16.msra.mxu0 0
    %1146 = vmatprep.subr.bf16.mxu0 0
    %1147 = vmatpush1.bf16.msra.mxu0 0
    %1148 = vmatprep.subr.bf16.mxu0 0
    %1149 = vmatpush1.bf16.msra.mxu0 %v1132
    %1150 = vmatprep.subr.bf16.mxu0 0
    %1151 = vmatpush2.bf16.msra.mxu0 0
    %1152 = vmatprep.subr.bf16.mxu0 0
    %1153 = vmatpush2.bf16.msra.mxu0 0
    %1154 = vmatprep.subr.bf16.mxu0 0
    %1155 = vmatpush2.bf16.msra.mxu0 0
    %1156 = vmatprep.subr.bf16.mxu0 0
    %1157 = vmatpush2.bf16.msra.mxu0 0
    %1158 = vmatprep.subr.bf16.mxu0 0
    %1159 = vmatpush2.bf16.msra.mxu0 0
    %1160 = vmatprep.subr.bf16.mxu0 0
    %1161 = vmatpush2.bf16.msra.mxu0 0
    %1162 = vmatprep.subr.bf16.mxu0 0
    %1163 = vmatpush2.bf16.msra.mxu0 0
    %1164 = vmatprep.subr.bf16.mxu0 0
    %1165 = vmatpush2.bf16.msra.mxu0 0
    %1166 = vmatprep.mubr.bf16.mxu0 0
    %1167 = vmatmul.mubr.bf16.gmra.mxu0 %v1129
    %v1168 = vpop.f32.mrf.mxu0
    %v1169 = vadd.f32 0.0, %v1168
    %v1170 = vpop.f32.mrf.mxu0
    %v1171 = vpop.f32.mrf.mxu0
    %v1172 = vpop.f32.mrf.mxu0
    %1173 = vdwg.mxu0
    %1174 = vrot.lane.b32.xlu0 %v192, 40
    %v1175 = vpop.permute.xlu0 %1174
    %v1177 = vsel %vm196, %v1125, 0
    %v1180 = vsel %vm321, %v1175, 0
    %1182 = vmatprep.subr.bf16.mxu0 0
    %1183 = vmatpush1.bf16.msra.mxu0 0
    %1184 = vmatprep.subr.bf16.mxu0 0
    %1185 = vmatpush1.bf16.msra.mxu0 0
    %1186 = vmatprep.subr.bf16.mxu0 0
    %1187 = vmatpush1.bf16.msra.mxu0 0
    %1188 = vmatprep.subr.bf16.mxu0 0
    %1189 = vmatpush1.bf16.msra.mxu0 0
    %1190 = vmatprep.subr.bf16.mxu0 0
    %1191 = vmatpush1.bf16.msra.mxu0 0
    %1192 = vmatprep.subr.bf16.mxu0 0
    %1193 = vmatpush1.bf16.msra.mxu0 0
    %1194 = vmatprep.subr.bf16.mxu0 0
    %1195 = vmatpush1.bf16.msra.mxu0 0
    %1196 = vmatprep.subr.bf16.mxu0 0
    %1197 = vmatpush1.bf16.msra.mxu0 %v1180
    %1198 = vmatprep.subr.bf16.mxu0 0
    %1199 = vmatpush2.bf16.msra.mxu0 0
    %1200 = vmatprep.subr.bf16.mxu0 0
    %1201 = vmatpush2.bf16.msra.mxu0 0
    %1202 = vmatprep.subr.bf16.mxu0 0
    %1203 = vmatpush2.bf16.msra.mxu0 0
    %1204 = vmatprep.subr.bf16.mxu0 0
    %1205 = vmatpush2.bf16.msra.mxu0 0
    %1206 = vmatprep.subr.bf16.mxu0 0
    %1207 = vmatpush2.bf16.msra.mxu0 0
    %1208 = vmatprep.subr.bf16.mxu0 0
    %1209 = vmatpush2.bf16.msra.mxu0 0
    %1210 = vmatprep.subr.bf16.mxu0 0
    %1211 = vmatpush2.bf16.msra.mxu0 0
    %1212 = vmatprep.subr.bf16.mxu0 0
    %1213 = vmatpush2.bf16.msra.mxu0 0
    %1214 = vmatprep.mubr.bf16.mxu0 0
    %1215 = vmatmul.mubr.bf16.gmra.mxu0 %v1177
    %v1216 = vpop.f32.mrf.mxu0
    %v1217 = vadd.f32 0.0, %v1216
    %v1218 = vpop.f32.mrf.mxu0
    %v1219 = vpop.f32.mrf.mxu0
    %v1220 = vpop.f32.mrf.mxu0
    %1221 = vdwg.mxu0
    %v1222 = vpack.c.bf16 %v1217, %v1169
    %v1223 = vld [vmem:[%s6 + $0xc] sm:$0xf]
    %v1225 = vsel %vm196, %v1222, 0
    %v1228 = vsel %vm321, %v1223, 0
    %1230 = vmatprep.subr.bf16.mxu0 0
    %1231 = vmatpush1.bf16.msra.mxu0 0
    %1232 = vmatprep.subr.bf16.mxu0 0
    %1233 = vmatpush1.bf16.msra.mxu0 0
    %1234 = vmatprep.subr.bf16.mxu0 0
    %1235 = vmatpush1.bf16.msra.mxu0 0
    %1236 = vmatprep.subr.bf16.mxu0 0
    %1237 = vmatpush1.bf16.msra.mxu0 0
    %1238 = vmatprep.subr.bf16.mxu0 0
    %1239 = vmatpush1.bf16.msra.mxu0 0
    %1240 = vmatprep.subr.bf16.mxu0 0
    %1241 = vmatpush1.bf16.msra.mxu0 0
    %1242 = vmatprep.subr.bf16.mxu0 0
    %1243 = vmatpush1.bf16.msra.mxu0 0
    %1244 = vmatprep.subr.bf16.mxu0 0
    %1245 = vmatpush1.bf16.msra.mxu0 %v1228
    %1246 = vmatprep.subr.bf16.mxu0 0
    %1247 = vmatpush2.bf16.msra.mxu0 0
    %1248 = vmatprep.subr.bf16.mxu0 0
    %1249 = vmatpush2.bf16.msra.mxu0 0
    %1250 = vmatprep.subr.bf16.mxu0 0
    %1251 = vmatpush2.bf16.msra.mxu0 0
    %1252 = vmatprep.subr.bf16.mxu0 0
    %1253 = vmatpush2.bf16.msra.mxu0 0
    %1254 = vmatprep.subr.bf16.mxu0 0
    %1255 = vmatpush2.bf16.msra.mxu0 0
    %1256 = vmatprep.subr.bf16.mxu0 0
    %1257 = vmatpush2.bf16.msra.mxu0 0
    %1258 = vmatprep.subr.bf16.mxu0 0
    %1259 = vmatpush2.bf16.msra.mxu0 0
    %1260 = vmatprep.subr.bf16.mxu0 0
    %1261 = vmatpush2.bf16.msra.mxu0 0
    %1262 = vmatprep.mubr.bf16.mxu0 0
    %1263 = vmatmul.mubr.bf16.gmra.mxu0 %v1225
    %v1264 = vpop.f32.mrf.mxu0
    %v1265 = vadd.f32 0.0, %v1264
    %v1266 = vpop.f32.mrf.mxu0
    %v1267 = vpop.f32.mrf.mxu0
    %v1268 = vadd.f32 0.0, %v1267
    %v1269 = vpop.f32.mrf.mxu0
    %1270 = vdwg.mxu0
    %v1271 = vadd.f32 %v1000, %v1265
    %v1272 = vadd.f32 %v1001, %v1268
    %v1273 = vadd.f32 %v73, %v1271
    %v1274 = vadd.f32 %v74, %v1272
    %v1275 = vld [vmem:[%s7] sm:$0x1]
    %v1277 = vlaneseq
    %v1278 = vshrl.u32 %v1277, 7
    %v1279 = vsub.s32 0, %v1278
    %v1280 = vrot.slane %v1275, %v1279
    %v1282 = vadd.f32 %v1273, %v1280
    %v1283 = vadd.f32 %v1274, %v1280
    %v1284 = vld [vmem:[%s8] sm:$0x1]
    %v1285 = vld [vmem:[#allocation2] sm:$0x1]
    %v1286 = vsel %vm79, %v1282, 0.0
    %1287 = vadd.xlane.f32.xlu0 %v1286
    %v1288 = vpop.xlane.xlu0 %1287
    %v1289 = vsel %vm79, %v1283, 0.0
    %1290 = vadd.xlane.f32.xlu0 %v1289
    %v1291 = vpop.xlane.xlu0 %1290
    %v1292 = vmul.f32 %v1288, %v86
    %v1293 = vmul.f32 %v1291, %v86
    %v1294 = vsub.f32 %v1282, %v1292
    %v1295 = vsub.f32 %v1283, %v1293
    %v1296 = vmul.f32 %v1294, %v1294
    %v1297 = vmul.f32 %v1295, %v1295
    %v1298 = vsel %vm79, %v1296, 0.0
    %1299 = vadd.xlane.f32.xlu0 %v1298
    %v1300 = vpop.xlane.xlu0 %1299
    %v1301 = vsel %vm79, %v1297, 0.0
    %1302 = vadd.xlane.f32.xlu0 %v1301
    %v1303 = vpop.xlane.xlu0 %1302
    %v1304 = vmul.f32 %v1300, %v86
    %v1305 = vmul.f32 %v1303, %v86
    %v1306 = vadd.f32 %v1304, 1e-05
    %v1307 = vadd.f32 %v1305, 1e-05
    %v1308 = vrsqrt.pop %v1306
    %v1309 = vrsqrt.pop %v1307
    %v1310 = vmul.f32 %v1294, %v1308
    %v1311 = vmul.f32 %v1295, %v1309
    %v1313 = vlaneseq
    %v1314 = vshrl.u32 %v1313, 7
    %v1315 = vsub.s32 0, %v1314
    %v1316 = vrot.slane %v1284, %v1315
    %v1318 = vmul.f32 %v1310, %v1316
    %v1319 = vmul.f32 %v1311, %v1316
    %v1321 = vlaneseq
    %v1322 = vshrl.u32 %v1321, 7
    %v1323 = vsub.s32 0, %v1322
    %v1324 = vrot.slane %v1285, %v1323
    %v1326 = vadd.f32 %v1318, %v1324
    %v1327 = vadd.f32 %v1319, %v1324
    %v1328 = vpack.c.bf16 %v1327, %v1326
    %v1329 = vld [vmem:[%s10] sm:$0xf]
    %v1330 = vld [vmem:[%s10 + $0x4] sm:$0xf]
    %v1331 = vld [vmem:[%s10 + $0x8] sm:$0xf]
    %v1332 = vld [vmem:[%s10 + $0xc] sm:$0xf]
    %v1333 = vld [vmem:[#allocation5] sm:$0x1]
    %v1335 = vlaneseq
    %v1336 = vshrl.u32 %v1335, 7
    %v1337 = vsub.s32 0, %v1336
    %v1338 = vrot.slane %v1333, %v1337
    %v1344 = vunpack.c.l.b16 %v1329
    %v1345 = vunpack.c.l.b16 %v1330
    %v1346 = vunpack.c.l.b16 %v1331
    %v1347 = vunpack.c.l.b16 %v1332
    %v1348 = vpack.c.b16 %v1345, %v1344
    %v1349 = vpack.c.b16 %v1347, %v1346
    %v1353 = vsel %vm79, %v1328, 0
    %1355 = vmatprep.subr.bf16.mxu0 0
    %1356 = vmatpush1.bf16.msra.mxu0 0
    %1357 = vmatprep.subr.bf16.mxu0 0
    %1358 = vmatpush1.bf16.msra.mxu0 0
    %1359 = vmatprep.subr.bf16.mxu0 0
    %1360 = vmatpush1.bf16.msra.mxu0 0
    %1361 = vmatprep.subr.bf16.mxu0 0
    %1362 = vmatpush1.bf16.msra.mxu0 0
    %1363 = vmatprep.subr.bf16.mxu0 0
    %1364 = vmatpush1.bf16.msra.mxu0 0
    %1365 = vmatprep.subr.bf16.mxu0 0
    %1366 = vmatpush1.bf16.msra.mxu0 0
    %1367 = vmatprep.subr.bf16.mxu0 0
    %1368 = vmatpush1.bf16.msra.mxu0 %v1349
    %1369 = vmatprep.subr.bf16.mxu0 0
    %1370 = vmatpush1.bf16.msra.mxu0 %v1348
    %1371 = vmatprep.subr.bf16.mxu0 0
    %1372 = vmatpush2.bf16.msra.mxu0 0
    %1373 = vmatprep.subr.bf16.mxu0 0
    %1374 = vmatpush2.bf16.msra.mxu0 0
    %1375 = vmatprep.subr.bf16.mxu0 0
    %1376 = vmatpush2.bf16.msra.mxu0 0
    %1377 = vmatprep.subr.bf16.mxu0 0
    %1378 = vmatpush2.bf16.msra.mxu0 0
    %1379 = vmatprep.subr.bf16.mxu0 0
    %1380 = vmatpush2.bf16.msra.mxu0 0
    %1381 = vmatprep.subr.bf16.mxu0 0
    %1382 = vmatpush2.bf16.msra.mxu0 0
    %1383 = vmatprep.subr.bf16.mxu0 0
    %1384 = vmatpush2.bf16.msra.mxu0 0
    %1385 = vmatprep.subr.bf16.mxu0 0
    %1386 = vmatpush2.bf16.msra.mxu0 0
    %1387 = vmatprep.mubr.bf16.mxu0 0
    %1388 = vmatmul.mubr.bf16.gmra.mxu0 %v1353
    %v1389 = vpop.f32.mrf.mxu0
    %v1390 = vadd.f32 %v1338, %v1389
    %v1391 = vpop.f32.mrf.mxu0
    %v1392 = vpop.f32.mrf.mxu0
    %v1393 = vadd.f32 %v1338, %v1392
    %v1394 = vpop.f32.mrf.mxu0
    %1395 = vdwg.mxu0
    %v1396 = vmul.f32 %v1390, 1.702
    %v1397 = vmul.f32 %v1393, 1.702
    %v1398 = vxor.u32 %v1396, 2147483648
    %v1399 = vxor.u32 %v1397, 2147483648
    %v1400 = vmul.f32 %v1398, 1.442695
    %v1401 = vpow.pop %v1400
    %v1402 = vmul.f32 %v1399, 1.442695
    %v1403 = vpow.pop %v1402
    %v1404 = vadd.f32 %v1401, 1.0
    %v1405 = vadd.f32 %v1403, 1.0
    %v1406 = vrcp.pop %v1404
    %v1407 = vmul.f32 1.0, %v1406
    %v1408 = vrcp.pop %v1405
    %v1409 = vmul.f32 1.0, %v1408
    %v1410 = vmul.f32 %v1390, %v1407
    %v1411 = vmul.f32 %v1393, %v1409
    %v1412 = vpack.c.bf16 %v1411, %v1410
    %v1413 = vld [vmem:[%s12] sm:$0xf]
    %v1414 = vld [vmem:[%s12 + $0x4] sm:$0xf]
    %v1415 = vld [vmem:[%s12 + $0x8] sm:$0xf]
    %v1416 = vld [vmem:[%s12 + $0xc] sm:$0xf]
    %v1417 = vld [vmem:[%s12 + $0x10] sm:$0xf]
    %v1418 = vld [vmem:[%s12 + $0x14] sm:$0xf]
    %v1419 = vld [vmem:[%s12 + $0x18] sm:$0xf]
    %v1420 = vld [vmem:[%s12 + $0x1c] sm:$0xf]
    %v1421 = vld [vmem:[%s12 + $0x20] sm:$0xf]
    %v1422 = vld [vmem:[%s12 + $0x24] sm:$0xf]
    %v1423 = vld [vmem:[%s12 + $0x28] sm:$0xf]
    %v1424 = vld [vmem:[%s12 + $0x2c] sm:$0xf]
    %v1425 = vld [vmem:[%s12 + $0x30] sm:$0xf]
    %v1426 = vld [vmem:[%s12 + $0x34] sm:$0xf]
    %v1427 = vld [vmem:[%s12 + $0x38] sm:$0xf]
    %v1428 = vld [vmem:[%s12 + $0x3c] sm:$0xf]
    %v1429 = vld [vmem:[%s13] sm:$0x1]
    %v1431 = vlaneseq
    %v1432 = vshrl.u32 %v1431, 7
    %v1433 = vsub.s32 0, %v1432
    %v1434 = vrot.slane %v1429, %v1433
    %v1452 = vunpack.c.l.b16 %v1413
    %v1453 = vunpack.c.l.b16 %v1414
    %v1454 = vunpack.c.l.b16 %v1415
    %v1455 = vunpack.c.l.b16 %v1416
    %v1456 = vunpack.c.l.b16 %v1417
    %v1457 = vunpack.c.l.b16 %v1418
    %v1458 = vunpack.c.l.b16 %v1419
    %v1459 = vunpack.c.l.b16 %v1420
    %v1460 = vunpack.c.l.b16 %v1421
    %v1461 = vunpack.c.l.b16 %v1422
    %v1462 = vunpack.c.l.b16 %v1423
    %v1463 = vunpack.c.l.b16 %v1424
    %v1464 = vunpack.c.l.b16 %v1425
    %v1465 = vunpack.c.l.b16 %v1426
    %v1466 = vunpack.c.l.b16 %v1427
    %v1467 = vunpack.c.l.b16 %v1428
    %v1468 = vpack.c.b16 %v1453, %v1452
    %v1469 = vpack.c.b16 %v1455, %v1454
    %v1470 = vpack.c.b16 %v1457, %v1456
    %v1471 = vpack.c.b16 %v1459, %v1458
    %v1472 = vpack.c.b16 %v1461, %v1460
    %v1473 = vpack.c.b16 %v1463, %v1462
    %v1474 = vpack.c.b16 %v1465, %v1464
    %v1475 = vpack.c.b16 %v1467, %v1466
    %1484 = vmatprep.subr.bf16.mxu0 0
    %1485 = vmatpush1.bf16.msra.mxu0 %v1475
    %1486 = vmatprep.subr.bf16.mxu0 0
    %1487 = vmatpush1.bf16.msra.mxu0 %v1474
    %1488 = vmatprep.subr.bf16.mxu0 0
    %1489 = vmatpush1.bf16.msra.mxu0 %v1473
    %1490 = vmatprep.subr.bf16.mxu0 0
    %1491 = vmatpush1.bf16.msra.mxu0 %v1472
    %1492 = vmatprep.subr.bf16.mxu0 0
    %1493 = vmatpush1.bf16.msra.mxu0 %v1471
    %1494 = vmatprep.subr.bf16.mxu0 0
    %1495 = vmatpush1.bf16.msra.mxu0 %v1470
    %1496 = vmatprep.subr.bf16.mxu0 0
    %1497 = vmatpush1.bf16.msra.mxu0 %v1469
    %1498 = vmatprep.subr.bf16.mxu0 0
    %1499 = vmatpush1.bf16.msra.mxu0 %v1468
    %1500 = vmatprep.subr.bf16.mxu0 0
    %1501 = vmatpush2.bf16.msra.mxu0 0
    %1502 = vmatprep.subr.bf16.mxu0 0
    %1503 = vmatpush2.bf16.msra.mxu0 0
    %1504 = vmatprep.subr.bf16.mxu0 0
    %1505 = vmatpush2.bf16.msra.mxu0 0
    %1506 = vmatprep.subr.bf16.mxu0 0
    %1507 = vmatpush2.bf16.msra.mxu0 0
    %1508 = vmatprep.subr.bf16.mxu0 0
    %1509 = vmatpush2.bf16.msra.mxu0 0
    %1510 = vmatprep.subr.bf16.mxu0 0
    %1511 = vmatpush2.bf16.msra.mxu0 0
    %1512 = vmatprep.subr.bf16.mxu0 0
    %1513 = vmatpush2.bf16.msra.mxu0 0
    %1514 = vmatprep.subr.bf16.mxu0 0
    %1515 = vmatpush2.bf16.msra.mxu0 0
    %1516 = vmatprep.mubr.bf16.mxu0 0
    %1517 = vmatmul.mubr.bf16.gmra.mxu0 %v1412
    %v1518 = vpop.f32.mrf.mxu0
    %v1519 = vadd.f32 %v1434, %v1518
    %v1520 = vpop.f32.mrf.mxu0
    %v1521 = vpop.f32.mrf.mxu0
    %v1522 = vadd.f32 %v1434, %v1521
    %v1523 = vpop.f32.mrf.mxu0
    %1524 = vdwg.mxu0
    %v1525 = vadd.f32 %v1282, %v1519
    %v1526 = vadd.f32 %v1283, %v1522
    %1527 = vst.msk [vmem:[#allocation7] sm:$0xff] %vm79, %v1525
    %1528 = vst.msk [vmem:[#allocation7 + $0x8] sm:$0xff] %vm79, %v1526
    // Predicated region
    $region66: #{tpu_custom_call.1} parent=1 // pred_check
      _
    $region67: #{tpu_custom_call.1} parent=1 // pred_check_branch
      %1530 = sbr.rel (0) target = $region69
    $region68: #{tpu_custom_call.1} parent=1 // pred_region
      %s1532 = ssub.s32 256, 256
      %1533 = vsyncadd [#allocation4], %s1532
      %s1534 = sshll.u32 [#allocation7], 4
      %s1535 = int_to_ptr.vmem [resolvable:$true] %s1534
      %1540 = dma.vmem_to_hbm [thread:$0]  %s1535, 256, %s14, [#allocation4], 128, 128, 8
    $region69: #{tpu_custom_call.1} parent=1 // pred_fallthru
      _
    // Predicated region
    $region70: #{tpu_custom_call.1} parent=1 // pred_check
      _
    $region71: #{tpu_custom_call.1} parent=1 // pred_check_branch
      %1542 = sbr.rel (0) target = $region73
    $region72: #{tpu_custom_call.1} parent=1 // pred_region
      %1543 = dma.done [#allocation4], 256
    $region73: #{tpu_custom_call.1} parent=1 // pred_fallthru
      _
    %1544 = vsyncpa [#allocation3], 1
    %1545 = vsyncpa [#allocation6], 1
    %1546 = vsyncpa [#allocation4], 1

</llo_original>
